<compile_context>
chip_gen: v6e
topology: v6e:2x2x1
jax: 0.10.0
libtpu: 0.0.40
codegen_flags: <defaults>
</compile_context>

<pallas_src>
import functools

import jax
import jax.numpy as jnp
from jax.experimental import pallas as pl
from jax.experimental.pallas import tpu as pltpu

EPS = 1e-5


def _vmem_limit_bytes():
    cap = 128 * 1024 * 1024
    try:
        cap = int(getattr(pltpu.get_tpu_info(), "vmem_capacity_bytes", cap))
    except Exception:
        pass
    # Half of physical, capped at 64 MiB: 64 MiB on v5e/v6e, 32 MiB on v7x.
    return max(16 * 1024 * 1024, min(cap // 2, 64 * 1024 * 1024))


_VMEM_LIMIT = _vmem_limit_bytes()


def _compiler_params():
    return pltpu.CompilerParams(
        dimension_semantics=("parallel",),
        vmem_limit_bytes=_VMEM_LIMIT,
    )


# ----------------------- row-tiled lane-dense matmul -------------------------
def _matmul_kernel(a_ref, w_ref, o_ref):
    o_ref[...] = jnp.dot(a_ref[...], w_ref[...], preferred_element_type=jnp.float32)


def _pick_row_tile(rows, target=256):
    """Largest multiple of 8 dividing `rows`, <= target, preferring >=2 steps."""
    best = None
    top = min(target, rows)
    top -= top % 8
    for cand in range(top, 7, -8):
        if rows % cand == 0:
            if rows // cand >= 2:
                return cand
            if best is None:
                best = cand
    return best if best is not None else rows


def _rowtiled_matmul(a_bf16, w_bf16):
    """(R, K) @ (K, C) -> (R, C) f32 via a row-tiled Pallas matmul.

    When C < 128 (and divides 128), G = 128 // C consecutive rows are grouped
    into one output row using a block-diagonal weight so HBM stores are
    full-width 128-lane vst (lane-dense out_spec) instead of masked vst.msk.
    """
    R, K = a_bf16.shape
    Kw, C = w_bf16.shape
    assert K == Kw
    G = 1
    if C < 128 and 128 % C == 0 and R % (128 // C) == 0:
        G = 128 // C
    if G > 1:
        a_bf16 = a_bf16.reshape(R // G, G * K)
        w_bf16 = jnp.kron(jnp.eye(G, dtype=w_bf16.dtype), w_bf16)
    Rg, Kg = a_bf16.shape
    Cg = w_bf16.shape[1]

    tr = _pick_row_tile(Rg)
    grid = (Rg // tr,)
    out = pl.pallas_call(
        _matmul_kernel,
        out_shape=jax.ShapeDtypeStruct((Rg, Cg), jnp.float32),
        grid=grid,
        in_specs=[
            pl.BlockSpec((tr, Kg), lambda r: (r, 0)),
            pl.BlockSpec((Kg, Cg), lambda r: (0, 0)),
        ],
        out_specs=pl.BlockSpec((tr, Cg), lambda r: (r, 0)),
        compiler_params=_compiler_params(),
    )(a_bf16, w_bf16)
    return out.reshape(R, C)


# --------------- pass 3: BN2 + SE gate + shortcut BN + add + ReLU ------------
def _finalize_kernel(y2_ref, sc_ref, s2_ref, b2_ref, gate_ref, ssc_ref, bsc_ref,
                     o_ref):
    # Everything lane-dense: last dim = Wo*Cout (multiple of 128 here).
    y2 = y2_ref[0] * s2_ref[...] + b2_ref[...]          # (Ho, Wo*Cout)
    sc = sc_ref[0] * ssc_ref[...] + bsc_ref[...]        # (Ho, Wo*Cout)
    o_ref[0] = jnp.maximum(y2 * gate_ref[0] + sc, 0.0)


# --------------------------------- wrapper -----------------------------------
def _im2col_3x3(x_nhwc, stride):
    """3x3 / pad=1 patch extraction -> (N*Ho*Wo, 9*C)."""
    N, H, W, C = x_nhwc.shape
    Ho = (H + 2 - 3) // stride + 1
    Wo = (W + 2 - 3) // stride + 1
    xp = jnp.pad(x_nhwc, ((0, 0), (1, 1), (1, 1), (0, 0)))
    cols = []
    for kh in range(3):
        for kw in range(3):
            cols.append(xp[:, kh:kh + 1 + stride * (Ho - 1):stride,
                           kw:kw + 1 + stride * (Wo - 1):stride, :])
    patches = jnp.stack(cols, axis=3)                    # (N, Ho, Wo, 9, C)
    return patches.reshape(N * Ho * Wo, 9 * C), Ho, Wo


@functools.partial(jax.jit, static_argnames=("stride",))
def resblock_forward(x_nchw, params, stride):
    x = jnp.transpose(x_nchw, (0, 2, 3, 1)).astype(jnp.float32)   # NCHW -> NHWC
    N, H, W, Cin = x.shape
    Cout = params["w1"].shape[-1]
    has_proj = (stride != 1) or (Cin != Cout)

    # ---- pass 1: conv1 + shortcut conv fused, row-tiled matmul --------------
    p1, Ho, Wo = _im2col_3x3(x, stride)                  # (R, 9*Cin)
    p1 = p1.astype(jnp.bfloat16)
    R = N * Ho * Wo

    w1 = params["w1"].reshape(9 * Cin, Cout)
    if has_proj:
        wf = jnp.concatenate([w1, params["wsc"].reshape(9 * Cin, Cout)], axis=1)
    else:
        wf = w1
    wf = wf.astype(jnp.bfloat16)                         # (9*Cin, Cf)

    y1sc = _rowtiled_matmul(p1, wf)                      # (R, Cf) f32

    # ---- BN1 / shortcut-BN batch statistics (training mode), plain-JAX glue -
    y1 = y1sc[:, :Cout]
    m1 = jnp.mean(y1, axis=0)
    v1 = jnp.var(y1, axis=0)
    s1 = params["g1"] * jax.lax.rsqrt(v1 + EPS)
    b1 = params["b1"] - m1 * s1

    if has_proj:
        sc_raw = y1sc[:, Cout:]
        msc = jnp.mean(sc_raw, axis=0)
        vsc = jnp.var(sc_raw, axis=0)
        ssc = params["gsc"] * jax.lax.rsqrt(vsc + EPS)
        bsc = params["bsc"] - msc * ssc
    else:
        sc_raw = x.reshape(R, Cout)
        ssc = jnp.ones((Cout,), jnp.float32)
        bsc = jnp.zeros((Cout,), jnp.float32)

    # BN1 + ReLU applied in glue (XLA fuses it into the conv2 im2col gather);
    # conv2 im2col built in the wrapper -> no in-kernel lane-axis concatenate.
    a1 = jnp.maximum(y1 * s1[None, :] + b1[None, :], 0.0)
    a1 = a1.reshape(N, Ho, Wo, Cout).astype(jnp.bfloat16)

    # ---- pass 2: conv2 as one K = 9*Cout row-tiled matmul -------------------
    p2, _, _ = _im2col_3x3(a1, 1)                        # (R, 9*Cout) bf16
    w2r = params["w2"].reshape(9 * Cout, Cout).astype(jnp.bfloat16)
    y2 = _rowtiled_matmul(p2, w2r)                       # (R, Cout) f32

    # ---- BN2 stats + SE MLP in plain-JAX glue --------------------------------
    m2 = jnp.mean(y2, axis=0)
    v2 = jnp.var(y2, axis=0)
    s2 = params["g2"] * jax.lax.rsqrt(v2 + EPS)
    b2 = params["b2"] - m2 * s2
    pooled_bn = (jnp.mean(y2.reshape(N, Ho * Wo, Cout), axis=1) * s2[None, :]
                 + b2[None, :])                          # (N, Cout)
    h = jnp.maximum(pooled_bn @ params["fc1w"] + params["fc1b"], 0.0)
    gate = jax.nn.sigmoid(h @ params["fc2w"] + params["fc2b"])     # (N, Cout)

    # ---- pass 3: fused BN2 + SE + shortcut BN + residual + ReLU (lane dense) -
    y2_ld = y2.reshape(N, Ho, Wo * Cout)
    sc_ld = sc_raw.reshape(N, Ho, Wo * Cout)
    s2_t = jnp.tile(s2.reshape(1, Cout), (1, Wo))                   # (1, Wo*Cout)
    b2_t = jnp.tile(b2.reshape(1, Cout), (1, Wo))
    ssc_t = jnp.tile(ssc.reshape(1, Cout), (1, Wo))
    bsc_t = jnp.tile(bsc.reshape(1, Cout), (1, Wo))
    gate_t = jnp.tile(gate.reshape(N, 1, Cout), (1, Wo, 1)).reshape(N, 1, Wo * Cout)

    ld_spec = pl.BlockSpec((1, Ho, Wo * Cout), lambda n: (n, 0, 0))
    vec_spec = pl.BlockSpec((1, Wo * Cout), lambda n: (0, 0))
    gate_spec = pl.BlockSpec((1, 1, Wo * Cout), lambda n: (n, 0, 0))

    out_ld = pl.pallas_call(
        _finalize_kernel,
        out_shape=jax.ShapeDtypeStruct((N, Ho, Wo * Cout), jnp.float32),
        grid=(N,),
        in_specs=[ld_spec, ld_spec, vec_spec, vec_spec, gate_spec, vec_spec,
                  vec_spec],
        out_specs=ld_spec,
        compiler_params=_compiler_params(),
    )(y2_ld, sc_ld, s2_t, b2_t, gate_t, ssc_t, bsc_t)

    out_nhwc = out_ld.reshape(N, Ho, Wo, Cout)
    return jnp.transpose(out_nhwc, (0, 3, 1, 2)), out_nhwc


# ---------------- pure-JAX reference (matched matmul precision) --------------
def _ref_conv_bf16(x, w, s):
    return jax.lax.conv_general_dilated(
        x.astype(jnp.bfloat16), w.astype(jnp.bfloat16), (s, s), ((1, 1), (1, 1)),
        dimension_numbers=("NHWC", "HWIO", "NHWC"),
        preferred_element_type=jnp.float32)


def _ref_bn(x, g, b):
    m = jnp.mean(x, axis=(0, 1, 2))
    v = jnp.var(x, axis=(0, 1, 2))
    return (x - m) * (g * jax.lax.rsqrt(v + EPS)) + b


def ref_forward(x_nhwc, params, stride, has_proj):
    y = jax.nn.relu(_ref_bn(_ref_conv_bf16(x_nhwc, params["w1"], stride),
                            params["g1"], params["b1"]))
    y = _ref_bn(_ref_conv_bf16(y, params["w2"], 1), params["g2"], params["b2"])
    pooled = jnp.mean(y, axis=(1, 2))
    h = jax.nn.relu(pooled @ params["fc1w"] + params["fc1b"])
    s = jax.nn.sigmoid(h @ params["fc2w"] + params["fc2b"])
    y = y * s[:, None, None, :]
    if has_proj:
        sc = _ref_bn(_ref_conv_bf16(x_nhwc, params["wsc"], stride),
                     params["gsc"], params["bsc"])
    else:
        sc = x_nhwc
    return jax.nn.relu(y + sc)


def init_params(key, cin, cout, reduction=16):
    cr = max(cout // reduction, 1)
    ks = jax.random.split(key, 14)
    return {
        "w1": 0.1 * jax.random.normal(ks[0], (3, 3, cin, cout), jnp.float32),
        "w2": 0.1 * jax.random.normal(ks[1], (3, 3, cout, cout), jnp.float32),
        "wsc": 0.1 * jax.random.normal(ks[2], (3, 3, cin, cout), jnp.float32),
        "g1": 1.0 + 0.1 * jax.random.normal(ks[3], (cout,), jnp.float32),
        "b1": 0.1 * jax.random.normal(ks[4], (cout,), jnp.float32),
        "g2": 1.0 + 0.1 * jax.random.normal(ks[5], (cout,), jnp.float32),
        "b2": 0.1 * jax.random.normal(ks[6], (cout,), jnp.float32),
        "gsc": 1.0 + 0.1 * jax.random.normal(ks[7], (cout,), jnp.float32),
        "bsc": 0.1 * jax.random.normal(ks[8], (cout,), jnp.float32),
        "fc1w": 0.3 * jax.random.normal(ks[9], (cout, cr), jnp.float32),
        "fc1b": 0.1 * jax.random.normal(ks[10], (cr,), jnp.float32),
        "fc2w": 0.3 * jax.random.normal(ks[11], (cr, cout), jnp.float32),
        "fc2b": 0.1 * jax.random.normal(ks[12], (cout,), jnp.float32),
    }


if __name__ == "__main__":
    key = jax.random.PRNGKey(0)
    kx, kp = jax.random.split(key)

    # ResBlock(inchannels=16, outchannels=32, kernel_size=3, stride=2)
    N, Cin, H, W = 2, 16, 16, 16
    Cout, stride = 32, 2

    x_nchw = jax.random.normal(kx, (N, Cin, H, W), jnp.float32)
    params = init_params(kp, Cin, Cout)

    out_nchw, out_nhwc = resblock_forward(x_nchw, params, stride)
    jax.block_until_ready(out_nchw)

    # Reference uses matched bf16-matmul / f32-accumulate precision; remaining
    # deltas are accumulation order and BN-stat rounding, so 3e-2 is loose yet
    # meaningful.
    ref = ref_forward(jnp.transpose(x_nchw, (0, 2, 3, 1)), params, stride,
                      has_proj=True)
    err = float(jnp.max(jnp.abs(out_nhwc - ref)))
    assert err < 3e-2, f"mismatch vs reference: max abs err = {err}"

    print("KERNEL_OK")
</pallas_src>

<mosaic_0001>
module attributes {stable_mosaic.version = 11 : i64} {
  func.func @_matmul_kernel(%arg0: i32, %arg1: memref<32x288xbf16, #tpu.memory_space<vmem>>, %arg2: memref<288x128xbf16, #tpu.memory_space<vmem>>, %arg3: memref<32x128xf32, #tpu.memory_space<vmem>>) attributes {dimension_semantics = [#tpu.dimension_semantics<parallel>], iteration_bounds = array<i64: 2>, scalar_prefetch = 0 : i64, scratch_operands = 0 : i64, tpu.core_type = #tpu.core_type<tc>, window_params = [{transform_indices = @transform_0, window_bounds = array<i64: 32, 288>}, {pipeline_mode = #tpu.pipeline_mode<synchronous>, transform_indices = @transform_1, window_bounds = array<i64: 288, 128>}, {transform_indices = @transform_2, window_bounds = array<i64: 32, 128>}]} {
    %c0 = arith.constant 0 : index
    %c0_0 = arith.constant 0 : index
    %0 = vector.load %arg1[%c0, %c0_0] : memref<32x288xbf16, #tpu.memory_space<vmem>>, vector<32x288xbf16>
    %c0_1 = arith.constant 0 : index
    %c0_2 = arith.constant 0 : index
    %1 = vector.load %arg2[%c0_1, %c0_2] : memref<288x128xbf16, #tpu.memory_space<vmem>>, vector<288x128xbf16>
    %cst = arith.constant dense<0.000000e+00> : vector<32x128xf32>
    %2 = tpu.matmul %0, %1, %cst {dimension_numbers = #tpu.dot_dimension_numbers<[1], [0], [0], [1], [0, 0, 1, 1], [], []>} : vector<32x288xbf16>, vector<288x128xbf16>, vector<32x128xf32> -> vector<32x128xf32>
    %c0_3 = arith.constant 0 : index
    %c0_4 = arith.constant 0 : index
    %3 = vector.load %arg3[%c0_3, %c0_4] : memref<32x128xf32, #tpu.memory_space<vmem>>, vector<32x128xf32>
    tpu.vector_store %arg3[%c0_3, %c0_4], %2 {strides = array<i32>} : memref<32x128xf32, #tpu.memory_space<vmem>>, vector<32x128xf32>,
    return
  }
  func.func @transform_0(%arg0: i32) -> (i32, i32) {
    %c0_i32 = arith.constant 0 : i32
    %c0_i32_0 = arith.constant 0 : i32
    return %arg0, %c0_i32 : i32, i32
  }
  func.func @transform_1(%arg0: i32) -> (i32, i32) {
    %c0_i32 = arith.constant 0 : i32
    %c0_i32_0 = arith.constant 0 : i32
    %c0_i32_1 = arith.constant 0 : i32
    return %c0_i32, %c0_i32_0 : i32, i32
  }
  func.func @transform_2(%arg0: i32) -> (i32, i32) {
    %c0_i32 = arith.constant 0 : i32
    %c0_i32_0 = arith.constant 0 : i32
    return %arg0, %c0_i32 : i32, i32
  }
}

module attributes {stable_mosaic.version = 11 : i64} {
  func.func @_matmul_kernel(%arg0: i32, %arg1: memref<16x1152xbf16, #tpu.memory_space<vmem>>, %arg2: memref<1152x128xbf16, #tpu.memory_space<vmem>>, %arg3: memref<16x128xf32, #tpu.memory_space<vmem>>) attributes {dimension_semantics = [#tpu.dimension_semantics<parallel>], iteration_bounds = array<i64: 2>, scalar_prefetch = 0 : i64, scratch_operands = 0 : i64, tpu.core_type = #tpu.core_type<tc>, window_params = [{transform_indices = @transform_0, window_bounds = array<i64: 16, 1152>}, {pipeline_mode = #tpu.pipeline_mode<synchronous>, transform_indices = @transform_1, window_bounds = array<i64: 1152, 128>}, {transform_indices = @transform_2, window_bounds = array<i64: 16, 128>}]} {
    %c0 = arith.constant 0 : index
    %c0_0 = arith.constant 0 : index
    %0 = vector.load %arg1[%c0, %c0_0] : memref<16x1152xbf16, #tpu.memory_space<vmem>>, vector<16x1152xbf16>
    %c0_1 = arith.constant 0 : index
    %c0_2 = arith.constant 0 : index
    %1 = vector.load %arg2[%c0_1, %c0_2] : memref<1152x128xbf16, #tpu.memory_space<vmem>>, vector<1152x128xbf16>
    %cst = arith.constant dense<0.000000e+00> : vector<16x128xf32>
    %2 = tpu.matmul %0, %1, %cst {dimension_numbers = #tpu.dot_dimension_numbers<[1], [0], [0], [1], [0, 0, 1, 1], [], []>} : vector<16x1152xbf16>, vector<1152x128xbf16>, vector<16x128xf32> -> vector<16x128xf32>
    %c0_3 = arith.constant 0 : index
    %c0_4 = arith.constant 0 : index
    %3 = vector.load %arg3[%c0_3, %c0_4] : memref<16x128xf32, #tpu.memory_space<vmem>>, vector<16x128xf32>
    tpu.vector_store %arg3[%c0_3, %c0_4], %2 {strides = array<i32>} : memref<16x128xf32, #tpu.memory_space<vmem>>, vector<16x128xf32>,
    return
  }
  func.func @transform_0(%arg0: i32) -> (i32, i32) {
    %c0_i32 = arith.constant 0 : i32
    %c0_i32_0 = arith.constant 0 : i32
    return %arg0, %c0_i32 : i32, i32
  }
  func.func @transform_1(%arg0: i32) -> (i32, i32) {
    %c0_i32 = arith.constant 0 : i32
    %c0_i32_0 = arith.constant 0 : i32
    %c0_i32_1 = arith.constant 0 : i32
    return %c0_i32, %c0_i32_0 : i32, i32
  }
  func.func @transform_2(%arg0: i32) -> (i32, i32) {
    %c0_i32 = arith.constant 0 : i32
    %c0_i32_0 = arith.constant 0 : i32
    return %arg0, %c0_i32 : i32, i32
  }
}

module attributes {stable_mosaic.version = 11 : i64} {
  func.func @_finalize_kernel(%arg0: i32, %arg1: memref<1x8x256xf32, #tpu.memory_space<vmem>>, %arg2: memref<1x8x256xf32, #tpu.memory_space<vmem>>, %arg3: memref<1x256xf32, #tpu.memory_space<vmem>>, %arg4: memref<1x256xf32, #tpu.memory_space<vmem>>, %arg5: memref<1x1x256xf32, #tpu.memory_space<vmem>>, %arg6: memref<1x256xf32, #tpu.memory_space<vmem>>, %arg7: memref<1x256xf32, #tpu.memory_space<vmem>>, %arg8: memref<1x8x256xf32, #tpu.memory_space<vmem>>) attributes {dimension_semantics = [#tpu.dimension_semantics<parallel>], iteration_bounds = array<i64: 2>, scalar_prefetch = 0 : i64, scratch_operands = 0 : i64, tpu.core_type = #tpu.core_type<tc>, window_params = [{transform_indices = @transform_0, window_bounds = array<i64: 1, 8, 256>}, {transform_indices = @transform_1, window_bounds = array<i64: 1, 8, 256>}, {pipeline_mode = #tpu.pipeline_mode<synchronous>, transform_indices = @transform_2, window_bounds = array<i64: 1, 256>}, {pipeline_mode = #tpu.pipeline_mode<synchronous>, transform_indices = @transform_3, window_bounds = array<i64: 1, 256>}, {transform_indices = @transform_4, window_bounds = array<i64: 1, 1, 256>}, {pipeline_mode = #tpu.pipeline_mode<synchronous>, transform_indices = @transform_5, window_bounds = array<i64: 1, 256>}, {pipeline_mode = #tpu.pipeline_mode<synchronous>, transform_indices = @transform_6, window_bounds = array<i64: 1, 256>}, {transform_indices = @transform_7, window_bounds = array<i64: 1, 8, 256>}]} {
    %c0 = arith.constant 0 : index
    %c0_0 = arith.constant 0 : index
    %c0_1 = arith.constant 0 : index
    %0 = vector.load %arg1[%c0, %c0_0, %c0_1] : memref<1x8x256xf32, #tpu.memory_space<vmem>>, vector<1x8x256xf32>
    %1 = vector.shape_cast %0 : vector<1x8x256xf32> to vector<8x256xf32>
    %c0_2 = arith.constant 0 : index
    %c0_3 = arith.constant 0 : index
    %2 = vector.load %arg3[%c0_2, %c0_3] : memref<1x256xf32, #tpu.memory_space<vmem>>, vector<1x256xf32>
    %3 = vector.broadcast %2 : vector<1x256xf32> to vector<8x256xf32>
    %4 = arith.mulf %1, %3 : vector<8x256xf32>
    %c0_4 = arith.constant 0 : index
    %c0_5 = arith.constant 0 : index
    %5 = vector.load %arg4[%c0_4, %c0_5] : memref<1x256xf32, #tpu.memory_space<vmem>>, vector<1x256xf32>
    %6 = vector.broadcast %5 : vector<1x256xf32> to vector<8x256xf32>
    %7 = arith.addf %4, %6 : vector<8x256xf32>
    %c0_6 = arith.constant 0 : index
    %c0_7 = arith.constant 0 : index
    %c0_8 = arith.constant 0 : index
    %8 = vector.load %arg2[%c0_6, %c0_7, %c0_8] : memref<1x8x256xf32, #tpu.memory_space<vmem>>, vector<1x8x256xf32>
    %9 = vector.shape_cast %8 : vector<1x8x256xf32> to vector<8x256xf32>
    %c0_9 = arith.constant 0 : index
    %c0_10 = arith.constant 0 : index
    %10 = vector.load %arg6[%c0_9, %c0_10] : memref<1x256xf32, #tpu.memory_space<vmem>>, vector<1x256xf32>
    %11 = vector.broadcast %10 : vector<1x256xf32> to vector<8x256xf32>
    %12 = arith.mulf %9, %11 : vector<8x256xf32>
    %c0_11 = arith.constant 0 : index
    %c0_12 = arith.constant 0 : index
    %13 = vector.load %arg7[%c0_11, %c0_12] : memref<1x256xf32, #tpu.memory_space<vmem>>, vector<1x256xf32>
    %14 = vector.broadcast %13 : vector<1x256xf32> to vector<8x256xf32>
    %15 = arith.addf %12, %14 : vector<8x256xf32>
    %c0_13 = arith.constant 0 : index
    %c0_14 = arith.constant 0 : index
    %c0_15 = arith.constant 0 : index
    %16 = vector.load %arg5[%c0_13, %c0_14, %c0_15] : memref<1x1x256xf32, #tpu.memory_space<vmem>>, vector<1x1x256xf32>
    %17 = vector.shape_cast %16 : vector<1x1x256xf32> to vector<1x256xf32>
    %18 = vector.broadcast %17 : vector<1x256xf32> to vector<8x256xf32>
    %19 = arith.mulf %7, %18 : vector<8x256xf32>
    %20 = arith.addf %19, %15 : vector<8x256xf32>
    %cst = arith.constant 0.000000e+00 : f32
    %21 = vector.broadcast %cst : f32 to vector<8x256xf32>
    %22 = arith.maximumf %20, %21 : vector<8x256xf32>
    %c0_16 = arith.constant 0 : index
    %c0_17 = arith.constant 0 : index
    %c0_18 = arith.constant 0 : index
    %23 = vector.load %arg8[%c0_16, %c0_17, %c0_18] : memref<1x8x256xf32, #tpu.memory_space<vmem>>, vector<1x8x256xf32>
    %24 = vector.shape_cast %23 : vector<1x8x256xf32> to vector<8x256xf32>
    %25 = vector.shape_cast %22 : vector<8x256xf32> to vector<1x8x256xf32>
    tpu.vector_store %arg8[%c0_16, %c0_17, %c0_18], %25 {strides = array<i32>} : memref<1x8x256xf32, #tpu.memory_space<vmem>>, vector<1x8x256xf32>,
    return
  }
  func.func @transform_0(%arg0: i32) -> (i32, i32, i32) {
    %c0_i32 = arith.constant 0 : i32
    %c0_i32_0 = arith.constant 0 : i32
    %c0_i32_1 = arith.constant 0 : i32
    return %arg0, %c0_i32, %c0_i32_0 : i32, i32, i32
  }
  func.func @transform_1(%arg0: i32) -> (i32, i32, i32) {
    %c0_i32 = arith.constant 0 : i32
    %c0_i32_0 = arith.constant 0 : i32
    %c0_i32_1 = arith.constant 0 : i32
    return %arg0, %c0_i32, %c0_i32_0 : i32, i32, i32
  }
  func.func @transform_2(%arg0: i32) -> (i32, i32) {
    %c0_i32 = arith.constant 0 : i32
    %c0_i32_0 = arith.constant 0 : i32
    %c0_i32_1 = arith.constant 0 : i32
    return %c0_i32, %c0_i32_0 : i32, i32
  }
  func.func @transform_3(%arg0: i32) -> (i32, i32) {
    %c0_i32 = arith.constant 0 : i32
    %c0_i32_0 = arith.constant 0 : i32
    %c0_i32_1 = arith.constant 0 : i32
    return %c0_i32, %c0_i32_0 : i32, i32
  }
  func.func @transform_4(%arg0: i32) -> (i32, i32, i32) {
    %c0_i32 = arith.constant 0 : i32
    %c0_i32_0 = arith.constant 0 : i32
    %c0_i32_1 = arith.constant 0 : i32
    return %arg0, %c0_i32, %c0_i32_0 : i32, i32, i32
  }
  func.func @transform_5(%arg0: i32) -> (i32, i32) {
    %c0_i32 = arith.constant 0 : i32
    %c0_i32_0 = arith.constant 0 : i32
    %c0_i32_1 = arith.constant 0 : i32
    return %c0_i32, %c0_i32_0 : i32, i32
  }
  func.func @transform_6(%arg0: i32) -> (i32, i32) {
    %c0_i32 = arith.constant 0 : i32
    %c0_i32_0 = arith.constant 0 : i32
    %c0_i32_1 = arith.constant 0 : i32
    return %c0_i32, %c0_i32_0 : i32, i32
  }
  func.func @transform_7(%arg0: i32) -> (i32, i32, i32) {
    %c0_i32 = arith.constant 0 : i32
    %c0_i32_0 = arith.constant 0 : i32
    %c0_i32_1 = arith.constant 0 : i32
    return %arg0, %c0_i32, %c0_i32_0 : i32, i32, i32
  }
}

</mosaic_0001>

<llo_original>
// kernel: resblock_forward.3
$region0: #{resblock_forward.3}
  #allocation0 [shape = 'u32[]', space=smem, size = 0x4, offset = 0x4, fixed_abs, tag = 'smem constant byte address 0x4 - core index']
  #allocation1 [shape = 'u32[144,128]{1,0:T(1,128)}', space=vmem, size = 0x12000, scoped, tag = 'internal scratch']
  %s0 = inlined_call_operand.vmem [shape: bf16[64,288], index: 0, kind: input, shape index: {}]
  %s1 = inlined_call_operand.vmem [shape: bf16[288,128], index: 1, kind: input, shape index: {}]
  %s2 = inlined_call_operand.vmem [shape: f32[64,128], index: 2, kind: output, shape index: {}]
  %s3 = sld [smem:[#allocation0]]
  $region41: #{resblock_forward.3} parent=0
    _
  %s5 = ssub.s32 1, %s3
  %s6 = scalar_select 0, %s5, %s3
  loop: start=0, step=1, limit=4
  $region2: #{resblock_forward.3} parent=0 // loop_pre_header
    _
  $region3: #{resblock_forward.3} parent=0 // loop_header
    %s8 = sphi 0, %s12
    %p9 = scmp.ge.s32.totalorder %s8, 4
    %s18 = sphi 0, %s20
    %s21 = sphi 0, %s18
    %s22 = sphi 0, %s21
    %s38 = sphi 0, %s22
    %s42 = sphi 0, %s42
    %s44 = sphi 0, %s42
    %s45 = sphi 0, %s44
    %s59 = sphi 0, %s45
    %s65 = sphi 0, %s67
    %s68 = sphi 0, %s65
    %s69 = sphi 0, %s68
    %s85 = sphi 0, %s69
  $region4: #{resblock_forward.3} parent=0 // loop_header_branch
    %11 = sbr.rel (%p9) target = $region8
  $region5: #{resblock_forward.3} parent=0 // loop_body
    %s13 = ssub.s32 %s8, 1
    %s14 = ssub.s32 %s8, 2
    %s15 = sadd.s32 %s8, 1
    %s16 = ssub.s32 %s8, %s15
    %p17 = scmp.eq.s32.totalorder %s16, 0
    %s19 = sadd.s32 %s18, 1
    %s20 = scalar_select %p17, %s18, %s19
    %p23 = pneg %p17
    %p24 = scmp.eq.s32.totalorder %s8, 1
    %p25 = por %p23, %p24
    %p26 = scmp.ne.s32.totalorder %s18, %s21
    %p27 = scmp.eq.s32.totalorder %s8, 0
    %p28 = por %p26, %p27
    %p29 = scmp.ne.s32.totalorder %s18, %s21
    %p30 = scmp.eq.s32.totalorder %s13, 1
    %p31 = por %p29, %p30
    %p32 = scmp.ne.s32.totalorder %s21, %s22
    %p33 = scmp.eq.s32.totalorder %s13, 0
    %p34 = por %p32, %p33
    %p35 = scmp.ne.s32.totalorder %s21, %s22
    %p36 = scmp.eq.s32.totalorder %s14, 1
    %p37 = por %p35, %p36
    %p39 = scmp.ne.s32.totalorder %s22, %s38
    %p40 = scmp.eq.s32.totalorder %s14, 0
    %p41 = por %p39, %p40
    %s43 = sadd.s32 %s42, 1
    %p46 = scmp.eq.s32.totalorder %s8, 1
    %p47 = scmp.ne.s32.totalorder %s42, %s44
    %p48 = scmp.eq.s32.totalorder %s8, 0
    %p49 = por %p47, %p48
    %p50 = scmp.ne.s32.totalorder %s42, %s44
    %p51 = scmp.eq.s32.totalorder %s13, 1
    %p52 = por %p50, %p51
    %p53 = scmp.ne.s32.totalorder %s44, %s45
    %p54 = scmp.eq.s32.totalorder %s13, 0
    %p55 = por %p53, %p54
    %p56 = scmp.ne.s32.totalorder %s44, %s45
    %p57 = scmp.eq.s32.totalorder %s14, 1
    %p58 = por %p56, %p57
    %p60 = scmp.ne.s32.totalorder %s45, %s59
    %p61 = scmp.eq.s32.totalorder %s14, 0
    %p62 = por %p60, %p61
    %s63 = ssub.s32 %s8, %s15
    %p64 = scmp.eq.s32.totalorder %s63, 0
    %s66 = sadd.s32 %s65, 1
    %s67 = scalar_select %p64, %s65, %s66
    %p70 = pneg %p64
    %p71 = scmp.eq.s32.totalorder %s8, 1
    %p72 = por %p70, %p71
    %p73 = scmp.ne.s32.totalorder %s65, %s68
    %p74 = scmp.eq.s32.totalorder %s8, 0
    %p75 = por %p73, %p74
    %p76 = scmp.ne.s32.totalorder %s65, %s68
    %p77 = scmp.eq.s32.totalorder %s13, 1
    %p78 = por %p76, %p77
    %p79 = scmp.ne.s32.totalorder %s68, %s69
    %p80 = scmp.eq.s32.totalorder %s13, 0
    %p81 = por %p79, %p80
    %p82 = scmp.ne.s32.totalorder %s68, %s69
    %p83 = scmp.eq.s32.totalorder %s14, 1
    %p84 = por %p82, %p83
    %p86 = scmp.ne.s32.totalorder %s69, %s85
    %p87 = scmp.eq.s32.totalorder %s14, 0
    %p88 = por %p86, %p87
    %p89 = scmp.le.s32.totalorder 1, %s8
    %p90 = scmp.lt.s32.totalorder %s8, 3
    %p91 = pnand %p89, %p90
    %p92 = pneg %p91
    // Predicated region
    $region9: #{resblock_forward.3} parent=5 // pred_check
      _
    $region10: #{resblock_forward.3} parent=5 // pred_check_branch
      %94 = sbr.rel (%p91) target = $region12
    $region11: #{resblock_forward.3} parent=5 // pred_region
      %s95 = ssub.s32 %s8, 1
      // Predicated region
      $region13: #{resblock_forward.3} parent=11 // pred_check
        %p96 = pneg %p55
      $region14: #{resblock_forward.3} parent=11 // pred_check_branch
        %98 = sbr.rel (%p96) target = $region16
      $region15: #{resblock_forward.3} parent=11 // pred_region
        _
      $region16: #{resblock_forward.3} parent=11 // pred_fallthru
        _
    $region12: #{resblock_forward.3} parent=5 // pred_fallthru
      _
    %p99 = scmp.lt.s32.totalorder %s8, 2
    // Predicated region
    $region17: #{resblock_forward.3} parent=5 // pred_check
      %p100 = pneg %p99
    $region18: #{resblock_forward.3} parent=5 // pred_check_branch
      %102 = sbr.rel (%p100) target = $region20
    $region19: #{resblock_forward.3} parent=5 // pred_region
      // Predicated region
      $region21: #{resblock_forward.3} parent=19 // pred_check
        %p103 = pneg %p28
      $region22: #{resblock_forward.3} parent=19 // pred_check_branch
        %105 = sbr.rel (%p103) target = $region24
      $region23: #{resblock_forward.3} parent=19 // pred_region
        %s106 = smul.u32 4, %s8
        %p107 = scmp.lt.s32.totalorder %s106, 7
        %s108 = scalar_select %p107, %s106, 7
        %s109 = smul.addr %s108, 3
        %s110 = smul.addr %s109, 4
        %s111 = scalar_lea.vmem %s0, %s110
        %s112 = smul.u32 4, %s8
      $region24: #{resblock_forward.3} parent=19 // pred_fallthru
        _
    $region20: #{resblock_forward.3} parent=5 // pred_fallthru
      _
    %p113 = scmp.le.s32.totalorder 1, %s8
    %p114 = scmp.lt.s32.totalorder %s8, 3
    %p115 = pnand %p113, %p114
    %p116 = pneg %p115
    // Predicated region
    $region25: #{resblock_forward.3} parent=5 // pred_check
      _
    $region26: #{resblock_forward.3} parent=5 // pred_check_branch
      %118 = sbr.rel (%p115) target = $region28
    $region27: #{resblock_forward.3} parent=5 // pred_region
      %s119 = ssub.s32 %s8, 1
      %s120 = smul.u32 4, %s13
      %p121 = scmp.lt.s32.totalorder %s120, 7
      %s122 = scalar_select %p121, %s120, 7
      %s123 = smul.addr %s122, 3
      %s124 = smul.addr %s123, 4
      %s125 = scalar_lea.vmem %s0, %s124
      %p126 = pneg %p34
      %p127 = pneg %p31
      %p128 = pneg %p55
      %p129 = pneg %p52
      %p130 = pneg %p81
      %p131 = pneg %p78
      %s132 = smul.u32 4, %s13
      %p133 = scmp.lt.s32.totalorder %s132, 7
      %s134 = scalar_select %p133, %s132, 7
      %s135 = smul.addr %s134, 8
      %s136 = scalar_lea.vmem %s2, %s135
      %s137 = smul.u32 4, %s13
      %p138 = scmp.lt.s32.totalorder %s137, 7
      %s139 = scalar_select %p138, %s137, 7
      %s140 = smul.addr %s139, 3
      %s141 = smul.addr %s140, 4
      %s142 = scalar_lea.vmem %s0, %s141
      %s143 = smul.u32 4, %s13
      %s144 = smul.u32 4, %s13
      %p145 = scmp.lt.s32.totalorder %s144, 7
      %s146 = scalar_select %p145, %s144, 7
      %s147 = smul.addr %s146, 8
      %s148 = scalar_lea.vmem %s2, %s147
      %s149 = smul.u32 4, %s13
      %v151 = vld [vmem:[%s142] sm:$0xff]
      %v152 = vld [vmem:[%s142 + $0x8] sm:$0xf]
      %v153 = vld [vmem:[%s142 + $0xc] sm:$0xff]
      %v154 = vld [vmem:[%s142 + $0x14] sm:$0xf]
      %v155 = vld [vmem:[%s142 + $0x18] sm:$0xff]
      %v156 = vld [vmem:[%s142 + $0x20] sm:$0xf]
      %v157 = vld [vmem:[%s142 + $0x24] sm:$0xff]
      %v158 = vld [vmem:[%s142 + $0x2c] sm:$0xf]
      %v159 = vld [vmem:[%s1] sm:$0xf]
      %v160 = vld [vmem:[%s1 + $0x4] sm:$0xf]
      %v161 = vld [vmem:[%s1 + $0x8] sm:$0xf]
      %v162 = vld [vmem:[%s1 + $0xc] sm:$0xf]
      %v163 = vld [vmem:[%s1 + $0x10] sm:$0xf]
      %v164 = vld [vmem:[%s1 + $0x14] sm:$0xf]
      %v165 = vld [vmem:[%s1 + $0x18] sm:$0xf]
      %v166 = vld [vmem:[%s1 + $0x1c] sm:$0xf]
      %v167 = vld [vmem:[%s1 + $0x20] sm:$0xf]
      %v168 = vld [vmem:[%s1 + $0x24] sm:$0xf]
      %v169 = vld [vmem:[%s1 + $0x28] sm:$0xf]
      %v170 = vld [vmem:[%s1 + $0x2c] sm:$0xf]
      %v171 = vld [vmem:[%s1 + $0x30] sm:$0xf]
      %v172 = vld [vmem:[%s1 + $0x34] sm:$0xf]
      %v173 = vld [vmem:[%s1 + $0x38] sm:$0xf]
      %v174 = vld [vmem:[%s1 + $0x3c] sm:$0xf]
      %v175 = vld [vmem:[%s1 + $0x40] sm:$0xf]
      %v176 = vld [vmem:[%s1 + $0x44] sm:$0xf]
      %v177 = vld [vmem:[%s1 + $0x48] sm:$0xf]
      %v178 = vld [vmem:[%s1 + $0x4c] sm:$0xf]
      %v179 = vld [vmem:[%s1 + $0x50] sm:$0xf]
      %v180 = vld [vmem:[%s1 + $0x54] sm:$0xf]
      %v181 = vld [vmem:[%s1 + $0x58] sm:$0xf]
      %v182 = vld [vmem:[%s1 + $0x5c] sm:$0xf]
      %v183 = vld [vmem:[%s1 + $0x60] sm:$0xf]
      %v184 = vld [vmem:[%s1 + $0x64] sm:$0xf]
      %v185 = vld [vmem:[%s1 + $0x68] sm:$0xf]
      %v186 = vld [vmem:[%s1 + $0x6c] sm:$0xf]
      %v187 = vld [vmem:[%s1 + $0x70] sm:$0xf]
      %v188 = vld [vmem:[%s1 + $0x74] sm:$0xf]
      %v189 = vld [vmem:[%s1 + $0x78] sm:$0xf]
      %v190 = vld [vmem:[%s1 + $0x7c] sm:$0xf]
      %v191 = vld [vmem:[%s1 + $0x80] sm:$0xf]
      %v192 = vld [vmem:[%s1 + $0x84] sm:$0xf]
      %v193 = vld [vmem:[%s1 + $0x88] sm:$0xf]
      %v194 = vld [vmem:[%s1 + $0x8c] sm:$0xf]
      %v203 = vunpack.c.l.b16 %v151
      %v204 = vunpack.c.h.b16 %v151
      %v205 = vunpack.c.l.b16 %v152
      %v206 = vunpack.c.l.b16 %v153
      %v207 = vunpack.c.h.b16 %v153
      %v208 = vunpack.c.l.b16 %v154
      %v209 = vunpack.c.l.b16 %v155
      %v210 = vunpack.c.h.b16 %v155
      %v211 = vunpack.c.l.b16 %v156
      %v212 = vunpack.c.l.b16 %v157
      %v213 = vunpack.c.h.b16 %v157
      %v214 = vunpack.c.l.b16 %v158
      %v215 = vpack.c.b16 %v206, %v203
      %v216 = vpack.c.b16 %v207, %v204
      %v217 = vpack.c.b16 %v208, %v205
      %v218 = vpack.c.b16 %v212, %v209
      %v219 = vpack.c.b16 %v213, %v210
      %v220 = vpack.c.b16 %v214, %v211
      %v261 = vunpack.c.l.b16 %v159
      %v262 = vunpack.c.l.b16 %v160
      %v263 = vunpack.c.l.b16 %v161
      %v264 = vunpack.c.l.b16 %v162
      %v265 = vunpack.c.l.b16 %v163
      %v266 = vunpack.c.l.b16 %v164
      %v267 = vunpack.c.l.b16 %v165
      %v268 = vunpack.c.l.b16 %v166
      %v269 = vunpack.c.l.b16 %v167
      %v270 = vunpack.c.l.b16 %v168
      %v271 = vunpack.c.l.b16 %v169
      %v272 = vunpack.c.l.b16 %v170
      %v273 = vunpack.c.l.b16 %v171
      %v274 = vunpack.c.l.b16 %v172
      %v275 = vunpack.c.l.b16 %v173
      %v276 = vunpack.c.l.b16 %v174
      %v277 = vunpack.c.l.b16 %v175
      %v278 = vunpack.c.l.b16 %v176
      %v279 = vunpack.c.l.b16 %v177
      %v280 = vunpack.c.l.b16 %v178
      %v281 = vunpack.c.l.b16 %v179
      %v282 = vunpack.c.l.b16 %v180
      %v283 = vunpack.c.l.b16 %v181
      %v284 = vunpack.c.l.b16 %v182
      %v285 = vunpack.c.l.b16 %v183
      %v286 = vunpack.c.l.b16 %v184
      %v287 = vunpack.c.l.b16 %v185
      %v288 = vunpack.c.l.b16 %v186
      %v289 = vunpack.c.l.b16 %v187
      %v290 = vunpack.c.l.b16 %v188
      %v291 = vunpack.c.l.b16 %v189
      %v292 = vunpack.c.l.b16 %v190
      %v293 = vunpack.c.l.b16 %v191
      %v294 = vunpack.c.l.b16 %v192
      %v295 = vunpack.c.l.b16 %v193
      %v296 = vunpack.c.l.b16 %v194
      %v297 = vpack.c.b16 %v262, %v261
      %v298 = vpack.c.b16 %v264, %v263
      %v299 = vpack.c.b16 %v266, %v265
      %v300 = vpack.c.b16 %v268, %v267
      %v301 = vpack.c.b16 %v270, %v269
      %v302 = vpack.c.b16 %v272, %v271
      %v303 = vpack.c.b16 %v274, %v273
      %v304 = vpack.c.b16 %v276, %v275
      %v305 = vpack.c.b16 %v278, %v277
      %v306 = vpack.c.b16 %v280, %v279
      %v307 = vpack.c.b16 %v282, %v281
      %v308 = vpack.c.b16 %v284, %v283
      %v309 = vpack.c.b16 %v286, %v285
      %v310 = vpack.c.b16 %v288, %v287
      %v311 = vpack.c.b16 %v290, %v289
      %v312 = vpack.c.b16 %v292, %v291
      %v313 = vpack.c.b16 %v294, %v293
      %v314 = vpack.c.b16 %v296, %v295
      %vm333 = vcmask 261120
      %v335 = vsel %vm333, %v217, 0
      %v338 = vsel %vm333, %v220, 0
      %340 = vmatprep.subr.bf16.mxu0 0
      %341 = vmatpush1.bf16.msra.mxu0 %v304
      %342 = vmatprep.subr.bf16.mxu0 0
      %343 = vmatpush1.bf16.msra.mxu0 %v303
      %344 = vmatprep.subr.bf16.mxu0 0
      %345 = vmatpush1.bf16.msra.mxu0 %v302
      %346 = vmatprep.subr.bf16.mxu0 0
      %347 = vmatpush1.bf16.msra.mxu0 %v301
      %348 = vmatprep.subr.bf16.mxu0 0
      %349 = vmatpush1.bf16.msra.mxu0 %v300
      %350 = vmatprep.subr.bf16.mxu0 0
      %351 = vmatpush1.bf16.msra.mxu0 %v299
      %352 = vmatprep.subr.bf16.mxu0 0
      %353 = vmatpush1.bf16.msra.mxu0 %v298
      %354 = vmatprep.subr.bf16.mxu0 0
      %355 = vmatpush1.bf16.msra.mxu0 %v297
      %356 = vmatprep.subr.bf16.mxu0 0
      %357 = vmatpush2.bf16.msra.mxu0 %v312
      %358 = vmatprep.subr.bf16.mxu0 0
      %359 = vmatpush2.bf16.msra.mxu0 %v311
      %360 = vmatprep.subr.bf16.mxu0 0
      %361 = vmatpush2.bf16.msra.mxu0 %v310
      %362 = vmatprep.subr.bf16.mxu0 0
      %363 = vmatpush2.bf16.msra.mxu0 %v309
      %364 = vmatprep.subr.bf16.mxu0 0
      %365 = vmatpush2.bf16.msra.mxu0 %v308
      %366 = vmatprep.subr.bf16.mxu0 0
      %367 = vmatpush2.bf16.msra.mxu0 %v307
      %368 = vmatprep.subr.bf16.mxu0 0
      %369 = vmatpush2.bf16.msra.mxu0 %v306
      %370 = vmatprep.subr.bf16.mxu0 0
      %371 = vmatpush2.bf16.msra.mxu0 %v305
      %372 = vmatprep.mubr.bf16.mxu0 %v216
      %373 = vmatmul.mubr.bf16.gmra.mxu0 %v215
      %v374 = vpop.f32.mrf.mxu0
      %v375 = vadd.f32 0.0, %v374
      %v376 = vpop.f32.mrf.mxu0
      %v377 = vpop.f32.mrf.mxu0
      %v378 = vadd.f32 0.0, %v377
      %v379 = vpop.f32.mrf.mxu0
      %380 = vmatprep.mubr.bf16.mxu0 %v219
      %381 = vmatmul.mubr.bf16.gmra.mxu0 %v218
      %v382 = vpop.f32.mrf.mxu0
      %v383 = vadd.f32 0.0, %v382
      %v384 = vpop.f32.mrf.mxu0
      %v385 = vpop.f32.mrf.mxu0
      %v386 = vadd.f32 0.0, %v385
      %v387 = vpop.f32.mrf.mxu0
      %388 = vdwg.mxu0
      %389 = vmatprep.subr.bf16.mxu0 0
      %390 = vmatpush1.bf16.msra.mxu0 0
      %391 = vmatprep.subr.bf16.mxu0 0
      %392 = vmatpush1.bf16.msra.mxu0 0
      %393 = vmatprep.subr.bf16.mxu0 0
      %394 = vmatpush1.bf16.msra.mxu0 0
      %395 = vmatprep.subr.bf16.mxu0 0
      %396 = vmatpush1.bf16.msra.mxu0 0
      %397 = vmatprep.subr.bf16.mxu0 0
      %398 = vmatpush1.bf16.msra.mxu0 0
      %399 = vmatprep.subr.bf16.mxu0 0
      %400 = vmatpush1.bf16.msra.mxu0 0
      %401 = vmatprep.subr.bf16.mxu0 0
      %402 = vmatpush1.bf16.msra.mxu0 %v314
      %403 = vmatprep.subr.bf16.mxu0 0
      %404 = vmatpush1.bf16.msra.mxu0 %v313
      %405 = vmatprep.subr.bf16.mxu0 0
      %406 = vmatpush2.bf16.msra.mxu0 0
      %407 = vmatprep.subr.bf16.mxu0 0
      %408 = vmatpush2.bf16.msra.mxu0 0
      %409 = vmatprep.subr.bf16.mxu0 0
      %410 = vmatpush2.bf16.msra.mxu0 0
      %411 = vmatprep.subr.bf16.mxu0 0
      %412 = vmatpush2.bf16.msra.mxu0 0
      %413 = vmatprep.subr.bf16.mxu0 0
      %414 = vmatpush2.bf16.msra.mxu0 0
      %415 = vmatprep.subr.bf16.mxu0 0
      %416 = vmatpush2.bf16.msra.mxu0 0
      %417 = vmatprep.subr.bf16.mxu0 0
      %418 = vmatpush2.bf16.msra.mxu0 0
      %419 = vmatprep.subr.bf16.mxu0 0
      %420 = vmatpush2.bf16.msra.mxu0 0
      %421 = vmatprep.mubr.bf16.mxu0 0
      %422 = vmatmul.mubr.bf16.gmra.mxu0 %v335
      %v423 = vpop.f32.mrf.mxu0
      %v424 = vadd.f32 %v375, %v423
      %v425 = vpop.f32.mrf.mxu0
      %v426 = vpop.f32.mrf.mxu0
      %v427 = vadd.f32 %v378, %v426
      %v428 = vpop.f32.mrf.mxu0
      %429 = vmatprep.mubr.bf16.mxu0 0
      %430 = vmatmul.mubr.bf16.gmra.mxu0 %v338
      %v431 = vpop.f32.mrf.mxu0
      %v432 = vadd.f32 %v383, %v431
      %v433 = vpop.f32.mrf.mxu0
      %v434 = vpop.f32.mrf.mxu0
      %v435 = vadd.f32 %v386, %v434
      %v436 = vpop.f32.mrf.mxu0
      %437 = vdwg.mxu0
      %438 = vst [vmem:[%s148] sm:$0xff] %v424
      %439 = vst [vmem:[%s148 + $0x8] sm:$0xff] %v427
      %440 = vst [vmem:[%s148 + $0x10] sm:$0xff] %v432
      %441 = vst [vmem:[%s148 + $0x18] sm:$0xff] %v435
      %s442 = smul.u32 4, %s13
      %p443 = scmp.lt.s32.totalorder %s442, 7
      %s444 = scalar_select %p443, %s442, 7
      %s445 = smul.addr %s444, 8
      %s446 = scalar_lea.vmem %s2, %s445
      // Predicated region
      $region29: #{resblock_forward.3} parent=27 // pred_check
        %p447 = pneg %p78
      $region30: #{resblock_forward.3} parent=27 // pred_check_branch
        %449 = sbr.rel (%p447) target = $region32
      $region31: #{resblock_forward.3} parent=27 // pred_region
        %s450 = smul.u32 4, %s13
      $region32: #{resblock_forward.3} parent=27 // pred_fallthru
        _
    $region28: #{resblock_forward.3} parent=5 // pred_fallthru
      _
    %p451 = scmp.le.s32.totalorder 2, %s8
    // Predicated region
    $region33: #{resblock_forward.3} parent=5 // pred_check
      %p452 = pneg %p451
    $region34: #{resblock_forward.3} parent=5 // pred_check_branch
      %454 = sbr.rel (%p452) target = $region36
    $region35: #{resblock_forward.3} parent=5 // pred_region
      %s455 = ssub.s32 %s8, 2
      // Predicated region
      $region37: #{resblock_forward.3} parent=35 // pred_check
        %p456 = pneg %p84
      $region38: #{resblock_forward.3} parent=35 // pred_check_branch
        %458 = sbr.rel (%p456) target = $region40
      $region39: #{resblock_forward.3} parent=35 // pred_region
        %s459 = smul.u32 4, %s14
        %p460 = scmp.lt.s32.totalorder %s459, 7
        %s461 = scalar_select %p460, %s459, 7
        %s462 = smul.addr %s461, 8
        %s463 = scalar_lea.vmem %s2, %s462
      $region40: #{resblock_forward.3} parent=35 // pred_fallthru
        _
    $region36: #{resblock_forward.3} parent=5 // pred_fallthru
      _
  $region6: #{resblock_forward.3} parent=0 // loop_footer
    %s12 = sadd.s32 1, %s8
  $region7: #{resblock_forward.3} parent=0 // loop_footer_branch
    %7 = sbr.rel target = $region3
  $region8: #{resblock_forward.3} parent=0 // loop_exit
    _

// kernel: resblock_forward.4
$region0: #{resblock_forward.4}
  #allocation0 [shape = 'u32[]', space=smem, size = 0x4, offset = 0x4, fixed_abs, tag = 'smem constant byte address 0x4 - core index']
  #allocation1 [shape = 'u32[144,128]{1,0:T(1,128)}', space=vmem, size = 0x12000, scoped, tag = 'internal scratch']
  %s0 = inlined_call_operand.vmem [shape: bf16[32,1152], index: 0, kind: input, shape index: {}]
  %s1 = inlined_call_operand.vmem [shape: bf16[1152,128], index: 1, kind: input, shape index: {}]
  %s2 = inlined_call_operand.vmem [shape: f32[32,128], index: 2, kind: output, shape index: {}]
  %s3 = sld [smem:[#allocation0]]
  $region41: #{resblock_forward.4} parent=0
    _
  %s5 = ssub.s32 1, %s3
  %s6 = scalar_select 0, %s5, %s3
  loop: start=0, step=1, limit=4
  $region2: #{resblock_forward.4} parent=0 // loop_pre_header
    _
  $region3: #{resblock_forward.4} parent=0 // loop_header
    %s8 = sphi 0, %s12
    %p9 = scmp.ge.s32.totalorder %s8, 4
    %s18 = sphi 0, %s20
    %s21 = sphi 0, %s18
    %s22 = sphi 0, %s21
    %s38 = sphi 0, %s22
    %s42 = sphi 0, %s42
    %s44 = sphi 0, %s42
    %s45 = sphi 0, %s44
    %s59 = sphi 0, %s45
    %s65 = sphi 0, %s67
    %s68 = sphi 0, %s65
    %s69 = sphi 0, %s68
    %s85 = sphi 0, %s69
  $region4: #{resblock_forward.4} parent=0 // loop_header_branch
    %11 = sbr.rel (%p9) target = $region8
  $region5: #{resblock_forward.4} parent=0 // loop_body
    %s13 = ssub.s32 %s8, 1
    %s14 = ssub.s32 %s8, 2
    %s15 = sadd.s32 %s8, 1
    %s16 = ssub.s32 %s8, %s15
    %p17 = scmp.eq.s32.totalorder %s16, 0
    %s19 = sadd.s32 %s18, 1
    %s20 = scalar_select %p17, %s18, %s19
    %p23 = pneg %p17
    %p24 = scmp.eq.s32.totalorder %s8, 1
    %p25 = por %p23, %p24
    %p26 = scmp.ne.s32.totalorder %s18, %s21
    %p27 = scmp.eq.s32.totalorder %s8, 0
    %p28 = por %p26, %p27
    %p29 = scmp.ne.s32.totalorder %s18, %s21
    %p30 = scmp.eq.s32.totalorder %s13, 1
    %p31 = por %p29, %p30
    %p32 = scmp.ne.s32.totalorder %s21, %s22
    %p33 = scmp.eq.s32.totalorder %s13, 0
    %p34 = por %p32, %p33
    %p35 = scmp.ne.s32.totalorder %s21, %s22
    %p36 = scmp.eq.s32.totalorder %s14, 1
    %p37 = por %p35, %p36
    %p39 = scmp.ne.s32.totalorder %s22, %s38
    %p40 = scmp.eq.s32.totalorder %s14, 0
    %p41 = por %p39, %p40
    %s43 = sadd.s32 %s42, 1
    %p46 = scmp.eq.s32.totalorder %s8, 1
    %p47 = scmp.ne.s32.totalorder %s42, %s44
    %p48 = scmp.eq.s32.totalorder %s8, 0
    %p49 = por %p47, %p48
    %p50 = scmp.ne.s32.totalorder %s42, %s44
    %p51 = scmp.eq.s32.totalorder %s13, 1
    %p52 = por %p50, %p51
    %p53 = scmp.ne.s32.totalorder %s44, %s45
    %p54 = scmp.eq.s32.totalorder %s13, 0
    %p55 = por %p53, %p54
    %p56 = scmp.ne.s32.totalorder %s44, %s45
    %p57 = scmp.eq.s32.totalorder %s14, 1
    %p58 = por %p56, %p57
    %p60 = scmp.ne.s32.totalorder %s45, %s59
    %p61 = scmp.eq.s32.totalorder %s14, 0
    %p62 = por %p60, %p61
    %s63 = ssub.s32 %s8, %s15
    %p64 = scmp.eq.s32.totalorder %s63, 0
    %s66 = sadd.s32 %s65, 1
    %s67 = scalar_select %p64, %s65, %s66
    %p70 = pneg %p64
    %p71 = scmp.eq.s32.totalorder %s8, 1
    %p72 = por %p70, %p71
    %p73 = scmp.ne.s32.totalorder %s65, %s68
    %p74 = scmp.eq.s32.totalorder %s8, 0
    %p75 = por %p73, %p74
    %p76 = scmp.ne.s32.totalorder %s65, %s68
    %p77 = scmp.eq.s32.totalorder %s13, 1
    %p78 = por %p76, %p77
    %p79 = scmp.ne.s32.totalorder %s68, %s69
    %p80 = scmp.eq.s32.totalorder %s13, 0
    %p81 = por %p79, %p80
    %p82 = scmp.ne.s32.totalorder %s68, %s69
    %p83 = scmp.eq.s32.totalorder %s14, 1
    %p84 = por %p82, %p83
    %p86 = scmp.ne.s32.totalorder %s69, %s85
    %p87 = scmp.eq.s32.totalorder %s14, 0
    %p88 = por %p86, %p87
    %p89 = scmp.le.s32.totalorder 1, %s8
    %p90 = scmp.lt.s32.totalorder %s8, 3
    %p91 = pnand %p89, %p90
    %p92 = pneg %p91
    // Predicated region
    $region9: #{resblock_forward.4} parent=5 // pred_check
      _
    $region10: #{resblock_forward.4} parent=5 // pred_check_branch
      %94 = sbr.rel (%p91) target = $region12
    $region11: #{resblock_forward.4} parent=5 // pred_region
      %s95 = ssub.s32 %s8, 1
      // Predicated region
      $region13: #{resblock_forward.4} parent=11 // pred_check
        %p96 = pneg %p55
      $region14: #{resblock_forward.4} parent=11 // pred_check_branch
        %98 = sbr.rel (%p96) target = $region16
      $region15: #{resblock_forward.4} parent=11 // pred_region
        _
      $region16: #{resblock_forward.4} parent=11 // pred_fallthru
        _
    $region12: #{resblock_forward.4} parent=5 // pred_fallthru
      _
    %p99 = scmp.lt.s32.totalorder %s8, 2
    // Predicated region
    $region17: #{resblock_forward.4} parent=5 // pred_check
      %p100 = pneg %p99
    $region18: #{resblock_forward.4} parent=5 // pred_check_branch
      %102 = sbr.rel (%p100) target = $region20
    $region19: #{resblock_forward.4} parent=5 // pred_region
      // Predicated region
      $region21: #{resblock_forward.4} parent=19 // pred_check
        %p103 = pneg %p28
      $region22: #{resblock_forward.4} parent=19 // pred_check_branch
        %105 = sbr.rel (%p103) target = $region24
      $region23: #{resblock_forward.4} parent=19 // pred_region
        %s106 = smul.u32 2, %s8
        %p107 = scmp.lt.s32.totalorder %s106, 3
        %s108 = scalar_select %p107, %s106, 3
        %s109 = smul.addr %s108, 9
        %s110 = smul.addr %s109, 4
        %s111 = scalar_lea.vmem %s0, %s110
        %s112 = smul.u32 2, %s8
      $region24: #{resblock_forward.4} parent=19 // pred_fallthru
        _
    $region20: #{resblock_forward.4} parent=5 // pred_fallthru
      _
    %p113 = scmp.le.s32.totalorder 1, %s8
    %p114 = scmp.lt.s32.totalorder %s8, 3
    %p115 = pnand %p113, %p114
    %p116 = pneg %p115
    // Predicated region
    $region25: #{resblock_forward.4} parent=5 // pred_check
      _
    $region26: #{resblock_forward.4} parent=5 // pred_check_branch
      %118 = sbr.rel (%p115) target = $region28
    $region27: #{resblock_forward.4} parent=5 // pred_region
      %s119 = ssub.s32 %s8, 1
      %s120 = smul.u32 2, %s13
      %p121 = scmp.lt.s32.totalorder %s120, 3
      %s122 = scalar_select %p121, %s120, 3
      %s123 = smul.addr %s122, 9
      %s124 = smul.addr %s123, 4
      %s125 = scalar_lea.vmem %s0, %s124
      %p126 = pneg %p34
      %p127 = pneg %p31
      %p128 = pneg %p55
      %p129 = pneg %p52
      %p130 = pneg %p81
      %p131 = pneg %p78
      %s132 = smul.u32 2, %s13
      %p133 = scmp.lt.s32.totalorder %s132, 3
      %s134 = scalar_select %p133, %s132, 3
      %s135 = smul.addr %s134, 8
      %s136 = scalar_lea.vmem %s2, %s135
      %s137 = smul.u32 2, %s13
      %p138 = scmp.lt.s32.totalorder %s137, 3
      %s139 = scalar_select %p138, %s137, 3
      %s140 = smul.addr %s139, 9
      %s141 = smul.addr %s140, 4
      %s142 = scalar_lea.vmem %s0, %s141
      %s143 = smul.u32 2, %s13
      %s144 = smul.u32 2, %s13
      %p145 = scmp.lt.s32.totalorder %s144, 3
      %s146 = scalar_select %p145, %s144, 3
      %s147 = smul.addr %s146, 8
      %s148 = scalar_lea.vmem %s2, %s147
      %s149 = smul.u32 2, %s13
      %v151 = vld [vmem:[%s142] sm:$0xff]
      %v152 = vld [vmem:[%s142 + $0x8] sm:$0xff]
      %v153 = vld [vmem:[%s142 + $0x10] sm:$0xff]
      %v154 = vld [vmem:[%s142 + $0x18] sm:$0xff]
      %v155 = vld [vmem:[%s142 + $0x20] sm:$0xf]
      %v156 = vld [vmem:[%s142 + $0x24] sm:$0xff]
      %v157 = vld [vmem:[%s142 + $0x2c] sm:$0xff]
      %v158 = vld [vmem:[%s142 + $0x34] sm:$0xff]
      %v159 = vld [vmem:[%s142 + $0x3c] sm:$0xff]
      %v160 = vld [vmem:[%s142 + $0x44] sm:$0xf]
      %v161 = vld [vmem:[%s1] sm:$0xf]
      %v162 = vld [vmem:[%s1 + $0x4] sm:$0xf]
      %v163 = vld [vmem:[%s1 + $0x8] sm:$0xf]
      %v164 = vld [vmem:[%s1 + $0xc] sm:$0xf]
      %v165 = vld [vmem:[%s1 + $0x10] sm:$0xf]
      %v166 = vld [vmem:[%s1 + $0x14] sm:$0xf]
      %v167 = vld [vmem:[%s1 + $0x18] sm:$0xf]
      %v168 = vld [vmem:[%s1 + $0x1c] sm:$0xf]
      %v169 = vld [vmem:[%s1 + $0x20] sm:$0xf]
      %v170 = vld [vmem:[%s1 + $0x24] sm:$0xf]
      %v171 = vld [vmem:[%s1 + $0x28] sm:$0xf]
      %v172 = vld [vmem:[%s1 + $0x2c] sm:$0xf]
      %v173 = vld [vmem:[%s1 + $0x30] sm:$0xf]
      %v174 = vld [vmem:[%s1 + $0x34] sm:$0xf]
      %v175 = vld [vmem:[%s1 + $0x38] sm:$0xf]
      %v176 = vld [vmem:[%s1 + $0x3c] sm:$0xf]
      %v177 = vld [vmem:[%s1 + $0x40] sm:$0xf]
      %v178 = vld [vmem:[%s1 + $0x44] sm:$0xf]
      %v179 = vld [vmem:[%s1 + $0x48] sm:$0xf]
      %v180 = vld [vmem:[%s1 + $0x4c] sm:$0xf]
      %v181 = vld [vmem:[%s1 + $0x50] sm:$0xf]
      %v182 = vld [vmem:[%s1 + $0x54] sm:$0xf]
      %v183 = vld [vmem:[%s1 + $0x58] sm:$0xf]
      %v184 = vld [vmem:[%s1 + $0x5c] sm:$0xf]
      %v185 = vld [vmem:[%s1 + $0x60] sm:$0xf]
      %v186 = vld [vmem:[%s1 + $0x64] sm:$0xf]
      %v187 = vld [vmem:[%s1 + $0x68] sm:$0xf]
      %v188 = vld [vmem:[%s1 + $0x6c] sm:$0xf]
      %v189 = vld [vmem:[%s1 + $0x70] sm:$0xf]
      %v190 = vld [vmem:[%s1 + $0x74] sm:$0xf]
      %v191 = vld [vmem:[%s1 + $0x78] sm:$0xf]
      %v192 = vld [vmem:[%s1 + $0x7c] sm:$0xf]
      %v193 = vld [vmem:[%s1 + $0x80] sm:$0xf]
      %v194 = vld [vmem:[%s1 + $0x84] sm:$0xf]
      %v195 = vld [vmem:[%s1 + $0x88] sm:$0xf]
      %v196 = vld [vmem:[%s1 + $0x8c] sm:$0xf]
      %v197 = vld [vmem:[%s1 + $0x90] sm:$0xf]
      %v198 = vld [vmem:[%s1 + $0x94] sm:$0xf]
      %v199 = vld [vmem:[%s1 + $0x98] sm:$0xf]
      %v200 = vld [vmem:[%s1 + $0x9c] sm:$0xf]
      %v201 = vld [vmem:[%s1 + $0xa0] sm:$0xf]
      %v202 = vld [vmem:[%s1 + $0xa4] sm:$0xf]
      %v203 = vld [vmem:[%s1 + $0xa8] sm:$0xf]
      %v204 = vld [vmem:[%s1 + $0xac] sm:$0xf]
      %v205 = vld [vmem:[%s1 + $0xb0] sm:$0xf]
      %v206 = vld [vmem:[%s1 + $0xb4] sm:$0xf]
      %v207 = vld [vmem:[%s1 + $0xb8] sm:$0xf]
      %v208 = vld [vmem:[%s1 + $0xbc] sm:$0xf]
      %v209 = vld [vmem:[%s1 + $0xc0] sm:$0xf]
      %v210 = vld [vmem:[%s1 + $0xc4] sm:$0xf]
      %v211 = vld [vmem:[%s1 + $0xc8] sm:$0xf]
      %v212 = vld [vmem:[%s1 + $0xcc] sm:$0xf]
      %v213 = vld [vmem:[%s1 + $0xd0] sm:$0xf]
      %v214 = vld [vmem:[%s1 + $0xd4] sm:$0xf]
      %v215 = vld [vmem:[%s1 + $0xd8] sm:$0xf]
      %v216 = vld [vmem:[%s1 + $0xdc] sm:$0xf]
      %v217 = vld [vmem:[%s1 + $0xe0] sm:$0xf]
      %v218 = vld [vmem:[%s1 + $0xe4] sm:$0xf]
      %v219 = vld [vmem:[%s1 + $0xe8] sm:$0xf]
      %v220 = vld [vmem:[%s1 + $0xec] sm:$0xf]
      %v221 = vld [vmem:[%s1 + $0xf0] sm:$0xf]
      %v222 = vld [vmem:[%s1 + $0xf4] sm:$0xf]
      %v223 = vld [vmem:[%s1 + $0xf8] sm:$0xf]
      %v224 = vld [vmem:[%s1 + $0xfc] sm:$0xf]
      %v225 = vld [vmem:[%s1 + $0x100] sm:$0xf]
      %v226 = vld [vmem:[%s1 + $0x104] sm:$0xf]
      %v227 = vld [vmem:[%s1 + $0x108] sm:$0xf]
      %v228 = vld [vmem:[%s1 + $0x10c] sm:$0xf]
      %v229 = vld [vmem:[%s1 + $0x110] sm:$0xf]
      %v230 = vld [vmem:[%s1 + $0x114] sm:$0xf]
      %v231 = vld [vmem:[%s1 + $0x118] sm:$0xf]
      %v232 = vld [vmem:[%s1 + $0x11c] sm:$0xf]
      %v233 = vld [vmem:[%s1 + $0x120] sm:$0xf]
      %v234 = vld [vmem:[%s1 + $0x124] sm:$0xf]
      %v235 = vld [vmem:[%s1 + $0x128] sm:$0xf]
      %v236 = vld [vmem:[%s1 + $0x12c] sm:$0xf]
      %v237 = vld [vmem:[%s1 + $0x130] sm:$0xf]
      %v238 = vld [vmem:[%s1 + $0x134] sm:$0xf]
      %v239 = vld [vmem:[%s1 + $0x138] sm:$0xf]
      %v240 = vld [vmem:[%s1 + $0x13c] sm:$0xf]
      %v241 = vld [vmem:[%s1 + $0x140] sm:$0xf]
      %v242 = vld [vmem:[%s1 + $0x144] sm:$0xf]
      %v243 = vld [vmem:[%s1 + $0x148] sm:$0xf]
      %v244 = vld [vmem:[%s1 + $0x14c] sm:$0xf]
      %v245 = vld [vmem:[%s1 + $0x150] sm:$0xf]
      %v246 = vld [vmem:[%s1 + $0x154] sm:$0xf]
      %v247 = vld [vmem:[%s1 + $0x158] sm:$0xf]
      %v248 = vld [vmem:[%s1 + $0x15c] sm:$0xf]
      %v249 = vld [vmem:[%s1 + $0x160] sm:$0xf]
      %v250 = vld [vmem:[%s1 + $0x164] sm:$0xf]
      %v251 = vld [vmem:[%s1 + $0x168] sm:$0xf]
      %v252 = vld [vmem:[%s1 + $0x16c] sm:$0xf]
      %v253 = vld [vmem:[%s1 + $0x170] sm:$0xf]
      %v254 = vld [vmem:[%s1 + $0x174] sm:$0xf]
      %v255 = vld [vmem:[%s1 + $0x178] sm:$0xf]
      %v256 = vld [vmem:[%s1 + $0x17c] sm:$0xf]
      %v257 = vld [vmem:[%s1 + $0x180] sm:$0xf]
      %v258 = vld [vmem:[%s1 + $0x184] sm:$0xf]
      %v259 = vld [vmem:[%s1 + $0x188] sm:$0xf]
      %v260 = vld [vmem:[%s1 + $0x18c] sm:$0xf]
      %v261 = vld [vmem:[%s1 + $0x190] sm:$0xf]
      %v262 = vld [vmem:[%s1 + $0x194] sm:$0xf]
      %v263 = vld [vmem:[%s1 + $0x198] sm:$0xf]
      %v264 = vld [vmem:[%s1 + $0x19c] sm:$0xf]
      %v265 = vld [vmem:[%s1 + $0x1a0] sm:$0xf]
      %v266 = vld [vmem:[%s1 + $0x1a4] sm:$0xf]
      %v267 = vld [vmem:[%s1 + $0x1a8] sm:$0xf]
      %v268 = vld [vmem:[%s1 + $0x1ac] sm:$0xf]
      %v269 = vld [vmem:[%s1 + $0x1b0] sm:$0xf]
      %v270 = vld [vmem:[%s1 + $0x1b4] sm:$0xf]
      %v271 = vld [vmem:[%s1 + $0x1b8] sm:$0xf]
      %v272 = vld [vmem:[%s1 + $0x1bc] sm:$0xf]
      %v273 = vld [vmem:[%s1 + $0x1c0] sm:$0xf]
      %v274 = vld [vmem:[%s1 + $0x1c4] sm:$0xf]
      %v275 = vld [vmem:[%s1 + $0x1c8] sm:$0xf]
      %v276 = vld [vmem:[%s1 + $0x1cc] sm:$0xf]
      %v277 = vld [vmem:[%s1 + $0x1d0] sm:$0xf]
      %v278 = vld [vmem:[%s1 + $0x1d4] sm:$0xf]
      %v279 = vld [vmem:[%s1 + $0x1d8] sm:$0xf]
      %v280 = vld [vmem:[%s1 + $0x1dc] sm:$0xf]
      %v281 = vld [vmem:[%s1 + $0x1e0] sm:$0xf]
      %v282 = vld [vmem:[%s1 + $0x1e4] sm:$0xf]
      %v283 = vld [vmem:[%s1 + $0x1e8] sm:$0xf]
      %v284 = vld [vmem:[%s1 + $0x1ec] sm:$0xf]
      %v285 = vld [vmem:[%s1 + $0x1f0] sm:$0xf]
      %v286 = vld [vmem:[%s1 + $0x1f4] sm:$0xf]
      %v287 = vld [vmem:[%s1 + $0x1f8] sm:$0xf]
      %v288 = vld [vmem:[%s1 + $0x1fc] sm:$0xf]
      %v289 = vld [vmem:[%s1 + $0x200] sm:$0xf]
      %v290 = vld [vmem:[%s1 + $0x204] sm:$0xf]
      %v291 = vld [vmem:[%s1 + $0x208] sm:$0xf]
      %v292 = vld [vmem:[%s1 + $0x20c] sm:$0xf]
      %v293 = vld [vmem:[%s1 + $0x210] sm:$0xf]
      %v294 = vld [vmem:[%s1 + $0x214] sm:$0xf]
      %v295 = vld [vmem:[%s1 + $0x218] sm:$0xf]
      %v296 = vld [vmem:[%s1 + $0x21c] sm:$0xf]
      %v297 = vld [vmem:[%s1 + $0x220] sm:$0xf]
      %v298 = vld [vmem:[%s1 + $0x224] sm:$0xf]
      %v299 = vld [vmem:[%s1 + $0x228] sm:$0xf]
      %v300 = vld [vmem:[%s1 + $0x22c] sm:$0xf]
      %v301 = vld [vmem:[%s1 + $0x230] sm:$0xf]
      %v302 = vld [vmem:[%s1 + $0x234] sm:$0xf]
      %v303 = vld [vmem:[%s1 + $0x238] sm:$0xf]
      %v304 = vld [vmem:[%s1 + $0x23c] sm:$0xf]
      %v315 = vunpack.c.l.b16 %v151
      %v316 = vunpack.c.h.b16 %v151
      %v317 = vunpack.c.l.b16 %v152
      %v318 = vunpack.c.h.b16 %v152
      %v319 = vunpack.c.l.b16 %v153
      %v320 = vunpack.c.h.b16 %v153
      %v321 = vunpack.c.l.b16 %v154
      %v322 = vunpack.c.h.b16 %v154
      %v323 = vunpack.c.l.b16 %v155
      %v324 = vunpack.c.l.b16 %v156
      %v325 = vunpack.c.h.b16 %v156
      %v326 = vunpack.c.l.b16 %v157
      %v327 = vunpack.c.h.b16 %v157
      %v328 = vunpack.c.l.b16 %v158
      %v329 = vunpack.c.h.b16 %v158
      %v330 = vunpack.c.l.b16 %v159
      %v331 = vunpack.c.h.b16 %v159
      %v332 = vunpack.c.l.b16 %v160
      %v333 = vpack.c.b16 %v324, %v315
      %v334 = vpack.c.b16 %v325, %v316
      %v335 = vpack.c.b16 %v326, %v317
      %v336 = vpack.c.b16 %v327, %v318
      %v337 = vpack.c.b16 %v328, %v319
      %v338 = vpack.c.b16 %v329, %v320
      %v339 = vpack.c.b16 %v330, %v321
      %v340 = vpack.c.b16 %v331, %v322
      %v341 = vpack.c.b16 %v332, %v323
      %v495 = vunpack.c.l.b16 %v161
      %v496 = vunpack.c.l.b16 %v162
      %v497 = vunpack.c.l.b16 %v163
      %v498 = vunpack.c.l.b16 %v164
      %v499 = vunpack.c.l.b16 %v165
      %v500 = vunpack.c.l.b16 %v166
      %v501 = vunpack.c.l.b16 %v167
      %v502 = vunpack.c.l.b16 %v168
      %v503 = vunpack.c.l.b16 %v169
      %v504 = vunpack.c.l.b16 %v170
      %v505 = vunpack.c.l.b16 %v171
      %v506 = vunpack.c.l.b16 %v172
      %v507 = vunpack.c.l.b16 %v173
      %v508 = vunpack.c.l.b16 %v174
      %v509 = vunpack.c.l.b16 %v175
      %v510 = vunpack.c.l.b16 %v176
      %v511 = vunpack.c.l.b16 %v177
      %v512 = vunpack.c.l.b16 %v178
      %v513 = vunpack.c.l.b16 %v179
      %v514 = vunpack.c.l.b16 %v180
      %v515 = vunpack.c.l.b16 %v181
      %v516 = vunpack.c.l.b16 %v182
      %v517 = vunpack.c.l.b16 %v183
      %v518 = vunpack.c.l.b16 %v184
      %v519 = vunpack.c.l.b16 %v185
      %v520 = vunpack.c.l.b16 %v186
      %v521 = vunpack.c.l.b16 %v187
      %v522 = vunpack.c.l.b16 %v188
      %v523 = vunpack.c.l.b16 %v189
      %v524 = vunpack.c.l.b16 %v190
      %v525 = vunpack.c.l.b16 %v191
      %v526 = vunpack.c.l.b16 %v192
      %v527 = vunpack.c.l.b16 %v193
      %v528 = vunpack.c.l.b16 %v194
      %v529 = vunpack.c.l.b16 %v195
      %v530 = vunpack.c.l.b16 %v196
      %v531 = vunpack.c.l.b16 %v197
      %v532 = vunpack.c.l.b16 %v198
      %v533 = vunpack.c.l.b16 %v199
      %v534 = vunpack.c.l.b16 %v200
      %v535 = vunpack.c.l.b16 %v201
      %v536 = vunpack.c.l.b16 %v202
      %v537 = vunpack.c.l.b16 %v203
      %v538 = vunpack.c.l.b16 %v204
      %v539 = vunpack.c.l.b16 %v205
      %v540 = vunpack.c.l.b16 %v206
      %v541 = vunpack.c.l.b16 %v207
      %v542 = vunpack.c.l.b16 %v208
      %v543 = vunpack.c.l.b16 %v209
      %v544 = vunpack.c.l.b16 %v210
      %v545 = vunpack.c.l.b16 %v211
      %v546 = vunpack.c.l.b16 %v212
      %v547 = vunpack.c.l.b16 %v213
      %v548 = vunpack.c.l.b16 %v214
      %v549 = vunpack.c.l.b16 %v215
      %v550 = vunpack.c.l.b16 %v216
      %v551 = vunpack.c.l.b16 %v217
      %v552 = vunpack.c.l.b16 %v218
      %v553 = vunpack.c.l.b16 %v219
      %v554 = vunpack.c.l.b16 %v220
      %v555 = vunpack.c.l.b16 %v221
      %v556 = vunpack.c.l.b16 %v222
      %v557 = vunpack.c.l.b16 %v223
      %v558 = vunpack.c.l.b16 %v224
      %v559 = vunpack.c.l.b16 %v225
      %v560 = vunpack.c.l.b16 %v226
      %v561 = vunpack.c.l.b16 %v227
      %v562 = vunpack.c.l.b16 %v228
      %v563 = vunpack.c.l.b16 %v229
      %v564 = vunpack.c.l.b16 %v230
      %v565 = vunpack.c.l.b16 %v231
      %v566 = vunpack.c.l.b16 %v232
      %v567 = vunpack.c.l.b16 %v233
      %v568 = vunpack.c.l.b16 %v234
      %v569 = vunpack.c.l.b16 %v235
      %v570 = vunpack.c.l.b16 %v236
      %v571 = vunpack.c.l.b16 %v237
      %v572 = vunpack.c.l.b16 %v238
      %v573 = vunpack.c.l.b16 %v239
      %v574 = vunpack.c.l.b16 %v240
      %v575 = vunpack.c.l.b16 %v241
      %v576 = vunpack.c.l.b16 %v242
      %v577 = vunpack.c.l.b16 %v243
      %v578 = vunpack.c.l.b16 %v244
      %v579 = vunpack.c.l.b16 %v245
      %v580 = vunpack.c.l.b16 %v246
      %v581 = vunpack.c.l.b16 %v247
      %v582 = vunpack.c.l.b16 %v248
      %v583 = vunpack.c.l.b16 %v249
      %v584 = vunpack.c.l.b16 %v250
      %v585 = vunpack.c.l.b16 %v251
      %v586 = vunpack.c.l.b16 %v252
      %v587 = vunpack.c.l.b16 %v253
      %v588 = vunpack.c.l.b16 %v254
      %v589 = vunpack.c.l.b16 %v255
      %v590 = vunpack.c.l.b16 %v256
      %v591 = vunpack.c.l.b16 %v257
      %v592 = vunpack.c.l.b16 %v258
      %v593 = vunpack.c.l.b16 %v259
      %v594 = vunpack.c.l.b16 %v260
      %v595 = vunpack.c.l.b16 %v261
      %v596 = vunpack.c.l.b16 %v262
      %v597 = vunpack.c.l.b16 %v263
      %v598 = vunpack.c.l.b16 %v264
      %v599 = vunpack.c.l.b16 %v265
      %v600 = vunpack.c.l.b16 %v266
      %v601 = vunpack.c.l.b16 %v267
      %v602 = vunpack.c.l.b16 %v268
      %v603 = vunpack.c.l.b16 %v269
      %v604 = vunpack.c.l.b16 %v270
      %v605 = vunpack.c.l.b16 %v271
      %v606 = vunpack.c.l.b16 %v272
      %v607 = vunpack.c.l.b16 %v273
      %v608 = vunpack.c.l.b16 %v274
      %v609 = vunpack.c.l.b16 %v275
      %v610 = vunpack.c.l.b16 %v276
      %v611 = vunpack.c.l.b16 %v277
      %v612 = vunpack.c.l.b16 %v278
      %v613 = vunpack.c.l.b16 %v279
      %v614 = vunpack.c.l.b16 %v280
      %v615 = vunpack.c.l.b16 %v281
      %v616 = vunpack.c.l.b16 %v282
      %v617 = vunpack.c.l.b16 %v283
      %v618 = vunpack.c.l.b16 %v284
      %v619 = vunpack.c.l.b16 %v285
      %v620 = vunpack.c.l.b16 %v286
      %v621 = vunpack.c.l.b16 %v287
      %v622 = vunpack.c.l.b16 %v288
      %v623 = vunpack.c.l.b16 %v289
      %v624 = vunpack.c.l.b16 %v290
      %v625 = vunpack.c.l.b16 %v291
      %v626 = vunpack.c.l.b16 %v292
      %v627 = vunpack.c.l.b16 %v293
      %v628 = vunpack.c.l.b16 %v294
      %v629 = vunpack.c.l.b16 %v295
      %v630 = vunpack.c.l.b16 %v296
      %v631 = vunpack.c.l.b16 %v297
      %v632 = vunpack.c.l.b16 %v298
      %v633 = vunpack.c.l.b16 %v299
      %v634 = vunpack.c.l.b16 %v300
      %v635 = vunpack.c.l.b16 %v301
      %v636 = vunpack.c.l.b16 %v302
      %v637 = vunpack.c.l.b16 %v303
      %v638 = vunpack.c.l.b16 %v304
      %v639 = vpack.c.b16 %v496, %v495
      %v640 = vpack.c.b16 %v498, %v497
      %v641 = vpack.c.b16 %v500, %v499
      %v642 = vpack.c.b16 %v502, %v501
      %v643 = vpack.c.b16 %v504, %v503
      %v644 = vpack.c.b16 %v506, %v505
      %v645 = vpack.c.b16 %v508, %v507
      %v646 = vpack.c.b16 %v510, %v509
      %v647 = vpack.c.b16 %v512, %v511
      %v648 = vpack.c.b16 %v514, %v513
      %v649 = vpack.c.b16 %v516, %v515
      %v650 = vpack.c.b16 %v518, %v517
      %v651 = vpack.c.b16 %v520, %v519
      %v652 = vpack.c.b16 %v522, %v521
      %v653 = vpack.c.b16 %v524, %v523
      %v654 = vpack.c.b16 %v526, %v525
      %v655 = vpack.c.b16 %v528, %v527
      %v656 = vpack.c.b16 %v530, %v529
      %v657 = vpack.c.b16 %v532, %v531
      %v658 = vpack.c.b16 %v534, %v533
      %v659 = vpack.c.b16 %v536, %v535
      %v660 = vpack.c.b16 %v538, %v537
      %v661 = vpack.c.b16 %v540, %v539
      %v662 = vpack.c.b16 %v542, %v541
      %v663 = vpack.c.b16 %v544, %v543
      %v664 = vpack.c.b16 %v546, %v545
      %v665 = vpack.c.b16 %v548, %v547
      %v666 = vpack.c.b16 %v550, %v549
      %v667 = vpack.c.b16 %v552, %v551
      %v668 = vpack.c.b16 %v554, %v553
      %v669 = vpack.c.b16 %v556, %v555
      %v670 = vpack.c.b16 %v558, %v557
      %v671 = vpack.c.b16 %v560, %v559
      %v672 = vpack.c.b16 %v562, %v561
      %v673 = vpack.c.b16 %v564, %v563
      %v674 = vpack.c.b16 %v566, %v565
      %v675 = vpack.c.b16 %v568, %v567
      %v676 = vpack.c.b16 %v570, %v569
      %v677 = vpack.c.b16 %v572, %v571
      %v678 = vpack.c.b16 %v574, %v573
      %v679 = vpack.c.b16 %v576, %v575
      %v680 = vpack.c.b16 %v578, %v577
      %v681 = vpack.c.b16 %v580, %v579
      %v682 = vpack.c.b16 %v582, %v581
      %v683 = vpack.c.b16 %v584, %v583
      %v684 = vpack.c.b16 %v586, %v585
      %v685 = vpack.c.b16 %v588, %v587
      %v686 = vpack.c.b16 %v590, %v589
      %v687 = vpack.c.b16 %v592, %v591
      %v688 = vpack.c.b16 %v594, %v593
      %v689 = vpack.c.b16 %v596, %v595
      %v690 = vpack.c.b16 %v598, %v597
      %v691 = vpack.c.b16 %v600, %v599
      %v692 = vpack.c.b16 %v602, %v601
      %v693 = vpack.c.b16 %v604, %v603
      %v694 = vpack.c.b16 %v606, %v605
      %v695 = vpack.c.b16 %v608, %v607
      %v696 = vpack.c.b16 %v610, %v609
      %v697 = vpack.c.b16 %v612, %v611
      %v698 = vpack.c.b16 %v614, %v613
      %v699 = vpack.c.b16 %v616, %v615
      %v700 = vpack.c.b16 %v618, %v617
      %v701 = vpack.c.b16 %v620, %v619
      %v702 = vpack.c.b16 %v622, %v621
      %v703 = vpack.c.b16 %v624, %v623
      %v704 = vpack.c.b16 %v626, %v625
      %v705 = vpack.c.b16 %v628, %v627
      %v706 = vpack.c.b16 %v630, %v629
      %v707 = vpack.c.b16 %v632, %v631
      %v708 = vpack.c.b16 %v634, %v633
      %v709 = vpack.c.b16 %v636, %v635
      %v710 = vpack.c.b16 %v638, %v637
      %783 = vmatprep.subr.bf16.mxu0 0
      %784 = vmatpush1.bf16.msra.mxu0 %v646
      %785 = vmatprep.subr.bf16.mxu0 0
      %786 = vmatpush1.bf16.msra.mxu0 %v645
      %787 = vmatprep.subr.bf16.mxu0 0
      %788 = vmatpush1.bf16.msra.mxu0 %v644
      %789 = vmatprep.subr.bf16.mxu0 0
      %790 = vmatpush1.bf16.msra.mxu0 %v643
      %791 = vmatprep.subr.bf16.mxu0 0
      %792 = vmatpush1.bf16.msra.mxu0 %v642
      %793 = vmatprep.subr.bf16.mxu0 0
      %794 = vmatpush1.bf16.msra.mxu0 %v641
      %795 = vmatprep.subr.bf16.mxu0 0
      %796 = vmatpush1.bf16.msra.mxu0 %v640
      %797 = vmatprep.subr.bf16.mxu0 0
      %798 = vmatpush1.bf16.msra.mxu0 %v639
      %799 = vmatprep.subr.bf16.mxu0 0
      %800 = vmatpush2.bf16.msra.mxu0 %v654
      %801 = vmatprep.subr.bf16.mxu0 0
      %802 = vmatpush2.bf16.msra.mxu0 %v653
      %803 = vmatprep.subr.bf16.mxu0 0
      %804 = vmatpush2.bf16.msra.mxu0 %v652
      %805 = vmatprep.subr.bf16.mxu0 0
      %806 = vmatpush2.bf16.msra.mxu0 %v651
      %807 = vmatprep.subr.bf16.mxu0 0
      %808 = vmatpush2.bf16.msra.mxu0 %v650
      %809 = vmatprep.subr.bf16.mxu0 0
      %810 = vmatpush2.bf16.msra.mxu0 %v649
      %811 = vmatprep.subr.bf16.mxu0 0
      %812 = vmatpush2.bf16.msra.mxu0 %v648
      %813 = vmatprep.subr.bf16.mxu0 0
      %814 = vmatpush2.bf16.msra.mxu0 %v647
      %815 = vmatprep.mubr.bf16.mxu0 %v334
      %816 = vmatmul.mubr.bf16.gmra.mxu0 %v333
      %v817 = vpop.f32.mrf.mxu0
      %v818 = vadd.f32 0.0, %v817
      %v819 = vpop.f32.mrf.mxu0
      %v820 = vpop.f32.mrf.mxu0
      %v821 = vadd.f32 0.0, %v820
      %v822 = vpop.f32.mrf.mxu0
      %823 = vdwg.mxu0
      %824 = vmatprep.subr.bf16.mxu0 0
      %825 = vmatpush1.bf16.msra.mxu0 %v662
      %826 = vmatprep.subr.bf16.mxu0 0
      %827 = vmatpush1.bf16.msra.mxu0 %v661
      %828 = vmatprep.subr.bf16.mxu0 0
      %829 = vmatpush1.bf16.msra.mxu0 %v660
      %830 = vmatprep.subr.bf16.mxu0 0
      %831 = vmatpush1.bf16.msra.mxu0 %v659
      %832 = vmatprep.subr.bf16.mxu0 0
      %833 = vmatpush1.bf16.msra.mxu0 %v658
      %834 = vmatprep.subr.bf16.mxu0 0
      %835 = vmatpush1.bf16.msra.mxu0 %v657
      %836 = vmatprep.subr.bf16.mxu0 0
      %837 = vmatpush1.bf16.msra.mxu0 %v656
      %838 = vmatprep.subr.bf16.mxu0 0
      %839 = vmatpush1.bf16.msra.mxu0 %v655
      %840 = vmatprep.subr.bf16.mxu0 0
      %841 = vmatpush2.bf16.msra.mxu0 %v670
      %842 = vmatprep.subr.bf16.mxu0 0
      %843 = vmatpush2.bf16.msra.mxu0 %v669
      %844 = vmatprep.subr.bf16.mxu0 0
      %845 = vmatpush2.bf16.msra.mxu0 %v668
      %846 = vmatprep.subr.bf16.mxu0 0
      %847 = vmatpush2.bf16.msra.mxu0 %v667
      %848 = vmatprep.subr.bf16.mxu0 0
      %849 = vmatpush2.bf16.msra.mxu0 %v666
      %850 = vmatprep.subr.bf16.mxu0 0
      %851 = vmatpush2.bf16.msra.mxu0 %v665
      %852 = vmatprep.subr.bf16.mxu0 0
      %853 = vmatpush2.bf16.msra.mxu0 %v664
      %854 = vmatprep.subr.bf16.mxu0 0
      %855 = vmatpush2.bf16.msra.mxu0 %v663
      %856 = vmatprep.mubr.bf16.mxu0 %v336
      %857 = vmatmul.mubr.bf16.gmra.mxu0 %v335
      %v858 = vpop.f32.mrf.mxu0
      %v859 = vadd.f32 %v818, %v858
      %v860 = vpop.f32.mrf.mxu0
      %v861 = vpop.f32.mrf.mxu0
      %v862 = vadd.f32 %v821, %v861
      %v863 = vpop.f32.mrf.mxu0
      %864 = vdwg.mxu0
      %865 = vmatprep.subr.bf16.mxu0 0
      %866 = vmatpush1.bf16.msra.mxu0 %v678
      %867 = vmatprep.subr.bf16.mxu0 0
      %868 = vmatpush1.bf16.msra.mxu0 %v677
      %869 = vmatprep.subr.bf16.mxu0 0
      %870 = vmatpush1.bf16.msra.mxu0 %v676
      %871 = vmatprep.subr.bf16.mxu0 0
      %872 = vmatpush1.bf16.msra.mxu0 %v675
      %873 = vmatprep.subr.bf16.mxu0 0
      %874 = vmatpush1.bf16.msra.mxu0 %v674
      %875 = vmatprep.subr.bf16.mxu0 0
      %876 = vmatpush1.bf16.msra.mxu0 %v673
      %877 = vmatprep.subr.bf16.mxu0 0
      %878 = vmatpush1.bf16.msra.mxu0 %v672
      %879 = vmatprep.subr.bf16.mxu0 0
      %880 = vmatpush1.bf16.msra.mxu0 %v671
      %881 = vmatprep.subr.bf16.mxu0 0
      %882 = vmatpush2.bf16.msra.mxu0 %v686
      %883 = vmatprep.subr.bf16.mxu0 0
      %884 = vmatpush2.bf16.msra.mxu0 %v685
      %885 = vmatprep.subr.bf16.mxu0 0
      %886 = vmatpush2.bf16.msra.mxu0 %v684
      %887 = vmatprep.subr.bf16.mxu0 0
      %888 = vmatpush2.bf16.msra.mxu0 %v683
      %889 = vmatprep.subr.bf16.mxu0 0
      %890 = vmatpush2.bf16.msra.mxu0 %v682
      %891 = vmatprep.subr.bf16.mxu0 0
      %892 = vmatpush2.bf16.msra.mxu0 %v681
      %893 = vmatprep.subr.bf16.mxu0 0
      %894 = vmatpush2.bf16.msra.mxu0 %v680
      %895 = vmatprep.subr.bf16.mxu0 0
      %896 = vmatpush2.bf16.msra.mxu0 %v679
      %897 = vmatprep.mubr.bf16.mxu0 %v338
      %898 = vmatmul.mubr.bf16.gmra.mxu0 %v337
      %v899 = vpop.f32.mrf.mxu0
      %v900 = vadd.f32 %v859, %v899
      %v901 = vpop.f32.mrf.mxu0
      %v902 = vpop.f32.mrf.mxu0
      %v903 = vadd.f32 %v862, %v902
      %v904 = vpop.f32.mrf.mxu0
      %905 = vdwg.mxu0
      %906 = vmatprep.subr.bf16.mxu0 0
      %907 = vmatpush1.bf16.msra.mxu0 %v694
      %908 = vmatprep.subr.bf16.mxu0 0
      %909 = vmatpush1.bf16.msra.mxu0 %v693
      %910 = vmatprep.subr.bf16.mxu0 0
      %911 = vmatpush1.bf16.msra.mxu0 %v692
      %912 = vmatprep.subr.bf16.mxu0 0
      %913 = vmatpush1.bf16.msra.mxu0 %v691
      %914 = vmatprep.subr.bf16.mxu0 0
      %915 = vmatpush1.bf16.msra.mxu0 %v690
      %916 = vmatprep.subr.bf16.mxu0 0
      %917 = vmatpush1.bf16.msra.mxu0 %v689
      %918 = vmatprep.subr.bf16.mxu0 0
      %919 = vmatpush1.bf16.msra.mxu0 %v688
      %920 = vmatprep.subr.bf16.mxu0 0
      %921 = vmatpush1.bf16.msra.mxu0 %v687
      %922 = vmatprep.subr.bf16.mxu0 0
      %923 = vmatpush2.bf16.msra.mxu0 %v702
      %924 = vmatprep.subr.bf16.mxu0 0
      %925 = vmatpush2.bf16.msra.mxu0 %v701
      %926 = vmatprep.subr.bf16.mxu0 0
      %927 = vmatpush2.bf16.msra.mxu0 %v700
      %928 = vmatprep.subr.bf16.mxu0 0
      %929 = vmatpush2.bf16.msra.mxu0 %v699
      %930 = vmatprep.subr.bf16.mxu0 0
      %931 = vmatpush2.bf16.msra.mxu0 %v698
      %932 = vmatprep.subr.bf16.mxu0 0
      %933 = vmatpush2.bf16.msra.mxu0 %v697
      %934 = vmatprep.subr.bf16.mxu0 0
      %935 = vmatpush2.bf16.msra.mxu0 %v696
      %936 = vmatprep.subr.bf16.mxu0 0
      %937 = vmatpush2.bf16.msra.mxu0 %v695
      %938 = vmatprep.mubr.bf16.mxu0 %v340
      %939 = vmatmul.mubr.bf16.gmra.mxu0 %v339
      %v940 = vpop.f32.mrf.mxu0
      %v941 = vadd.f32 %v900, %v940
      %v942 = vpop.f32.mrf.mxu0
      %v943 = vpop.f32.mrf.mxu0
      %v944 = vadd.f32 %v903, %v943
      %v945 = vpop.f32.mrf.mxu0
      %946 = vdwg.mxu0
      %947 = vmatprep.subr.bf16.mxu0 0
      %948 = vmatpush1.bf16.msra.mxu0 %v710
      %949 = vmatprep.subr.bf16.mxu0 0
      %950 = vmatpush1.bf16.msra.mxu0 %v709
      %951 = vmatprep.subr.bf16.mxu0 0
      %952 = vmatpush1.bf16.msra.mxu0 %v708
      %953 = vmatprep.subr.bf16.mxu0 0
      %954 = vmatpush1.bf16.msra.mxu0 %v707
      %955 = vmatprep.subr.bf16.mxu0 0
      %956 = vmatpush1.bf16.msra.mxu0 %v706
      %957 = vmatprep.subr.bf16.mxu0 0
      %958 = vmatpush1.bf16.msra.mxu0 %v705
      %959 = vmatprep.subr.bf16.mxu0 0
      %960 = vmatpush1.bf16.msra.mxu0 %v704
      %961 = vmatprep.subr.bf16.mxu0 0
      %962 = vmatpush1.bf16.msra.mxu0 %v703
      %963 = vmatprep.subr.bf16.mxu0 0
      %964 = vmatpush2.bf16.msra.mxu0 0
      %965 = vmatprep.subr.bf16.mxu0 0
      %966 = vmatpush2.bf16.msra.mxu0 0
      %967 = vmatprep.subr.bf16.mxu0 0
      %968 = vmatpush2.bf16.msra.mxu0 0
      %969 = vmatprep.subr.bf16.mxu0 0
      %970 = vmatpush2.bf16.msra.mxu0 0
      %971 = vmatprep.subr.bf16.mxu0 0
      %972 = vmatpush2.bf16.msra.mxu0 0
      %973 = vmatprep.subr.bf16.mxu0 0
      %974 = vmatpush2.bf16.msra.mxu0 0
      %975 = vmatprep.subr.bf16.mxu0 0
      %976 = vmatpush2.bf16.msra.mxu0 0
      %977 = vmatprep.subr.bf16.mxu0 0
      %978 = vmatpush2.bf16.msra.mxu0 0
      %979 = vmatprep.mubr.bf16.mxu0 0
      %980 = vmatmul.mubr.bf16.gmra.mxu0 %v341
      %v981 = vpop.f32.mrf.mxu0
      %v982 = vadd.f32 %v941, %v981
      %v983 = vpop.f32.mrf.mxu0
      %v984 = vpop.f32.mrf.mxu0
      %v985 = vadd.f32 %v944, %v984
      %v986 = vpop.f32.mrf.mxu0
      %987 = vdwg.mxu0
      %988 = vst [vmem:[%s148] sm:$0xff] %v982
      %989 = vst [vmem:[%s148 + $0x8] sm:$0xff] %v985
      %s990 = smul.u32 2, %s13
      %p991 = scmp.lt.s32.totalorder %s990, 3
      %s992 = scalar_select %p991, %s990, 3
      %s993 = smul.addr %s992, 8
      %s994 = scalar_lea.vmem %s2, %s993
      // Predicated region
      $region29: #{resblock_forward.4} parent=27 // pred_check
        %p995 = pneg %p78
      $region30: #{resblock_forward.4} parent=27 // pred_check_branch
        %997 = sbr.rel (%p995) target = $region32
      $region31: #{resblock_forward.4} parent=27 // pred_region
        %s998 = smul.u32 2, %s13
      $region32: #{resblock_forward.4} parent=27 // pred_fallthru
        _
    $region28: #{resblock_forward.4} parent=5 // pred_fallthru
      _
    %p999 = scmp.le.s32.totalorder 2, %s8
    // Predicated region
    $region33: #{resblock_forward.4} parent=5 // pred_check
      %p1000 = pneg %p999
    $region34: #{resblock_forward.4} parent=5 // pred_check_branch
      %1002 = sbr.rel (%p1000) target = $region36
    $region35: #{resblock_forward.4} parent=5 // pred_region
      %s1003 = ssub.s32 %s8, 2
      // Predicated region
      $region37: #{resblock_forward.4} parent=35 // pred_check
        %p1004 = pneg %p84
      $region38: #{resblock_forward.4} parent=35 // pred_check_branch
        %1006 = sbr.rel (%p1004) target = $region40
      $region39: #{resblock_forward.4} parent=35 // pred_region
        %s1007 = smul.u32 2, %s14
        %p1008 = scmp.lt.s32.totalorder %s1007, 3
        %s1009 = scalar_select %p1008, %s1007, 3
        %s1010 = smul.addr %s1009, 8
        %s1011 = scalar_lea.vmem %s2, %s1010
      $region40: #{resblock_forward.4} parent=35 // pred_fallthru
        _
    $region36: #{resblock_forward.4} parent=5 // pred_fallthru
      _
  $region6: #{resblock_forward.4} parent=0 // loop_footer
    %s12 = sadd.s32 1, %s8
  $region7: #{resblock_forward.4} parent=0 // loop_footer_branch
    %7 = sbr.rel target = $region3
  $region8: #{resblock_forward.4} parent=0 // loop_exit
    _

// kernel: resblock_forward.5
$region0: #{resblock_forward.5}
  #allocation0 [shape = 'u32[]', space=smem, size = 0x4, offset = 0x4, fixed_abs, tag = 'smem constant byte address 0x4 - core index']
  #allocation1 [shape = 'u32[144,128]{1,0:T(1,128)}', space=vmem, size = 0x12000, scoped, tag = 'internal scratch']
  %s0 = inlined_call_operand.vmem [shape: f32[2,8,256], index: 0, kind: input, shape index: {}]
  %s1 = inlined_call_operand.vmem [shape: f32[2,8,256], index: 1, kind: input, shape index: {}]
  %s2 = inlined_call_operand.vmem [shape: f32[1,256], index: 2, kind: input, shape index: {}]
  %s3 = inlined_call_operand.vmem [shape: f32[1,256], index: 3, kind: input, shape index: {}]
  %s4 = inlined_call_operand.vmem [shape: f32[2,1,256], index: 4, kind: input, shape index: {}]
  %s5 = inlined_call_operand.vmem [shape: f32[1,256], index: 5, kind: input, shape index: {}]
  %s6 = inlined_call_operand.vmem [shape: f32[1,256], index: 6, kind: input, shape index: {}]
  %s7 = inlined_call_operand.vmem [shape: f32[2,8,256], index: 7, kind: output, shape index: {}]
  %s8 = sld [smem:[#allocation0]]
  $region61: #{resblock_forward.5} parent=0
    _
  %s10 = ssub.s32 1, %s8
  %s11 = scalar_select 0, %s10, %s8
  loop: start=0, step=1, limit=4
  $region2: #{resblock_forward.5} parent=0 // loop_pre_header
    _
  $region3: #{resblock_forward.5} parent=0 // loop_header
    %s13 = sphi 0, %s17
    %p14 = scmp.ge.s32.totalorder %s13, 4
    %s23 = sphi 0, %s25
    %s26 = sphi 0, %s23
    %s27 = sphi 0, %s26
    %s43 = sphi 0, %s27
    %s49 = sphi 0, %s51
    %s52 = sphi 0, %s49
    %s53 = sphi 0, %s52
    %s69 = sphi 0, %s53
    %s73 = sphi 0, %s73
    %s75 = sphi 0, %s73
    %s76 = sphi 0, %s75
    %s90 = sphi 0, %s76
    %s94 = sphi 0, %s94
    %s96 = sphi 0, %s94
    %s97 = sphi 0, %s96
    %s111 = sphi 0, %s97
    %s117 = sphi 0, %s119
    %s120 = sphi 0, %s117
    %s121 = sphi 0, %s120
    %s137 = sphi 0, %s121
    %s141 = sphi 0, %s141
    %s143 = sphi 0, %s141
    %s144 = sphi 0, %s143
    %s158 = sphi 0, %s144
    %s162 = sphi 0, %s162
    %s164 = sphi 0, %s162
    %s165 = sphi 0, %s164
    %s179 = sphi 0, %s165
    %s185 = sphi 0, %s187
    %s188 = sphi 0, %s185
    %s189 = sphi 0, %s188
    %s205 = sphi 0, %s189
  $region4: #{resblock_forward.5} parent=0 // loop_header_branch
    %16 = sbr.rel (%p14) target = $region8
  $region5: #{resblock_forward.5} parent=0 // loop_body
    %s18 = ssub.s32 %s13, 1
    %s19 = ssub.s32 %s13, 2
    %s20 = sadd.s32 %s13, 1
    %s21 = ssub.s32 %s13, %s20
    %p22 = scmp.eq.s32.totalorder %s21, 0
    %s24 = sadd.s32 %s23, 1
    %s25 = scalar_select %p22, %s23, %s24
    %p28 = pneg %p22
    %p29 = scmp.eq.s32.totalorder %s13, 1
    %p30 = por %p28, %p29
    %p31 = scmp.ne.s32.totalorder %s23, %s26
    %p32 = scmp.eq.s32.totalorder %s13, 0
    %p33 = por %p31, %p32
    %p34 = scmp.ne.s32.totalorder %s23, %s26
    %p35 = scmp.eq.s32.totalorder %s18, 1
    %p36 = por %p34, %p35
    %p37 = scmp.ne.s32.totalorder %s26, %s27
    %p38 = scmp.eq.s32.totalorder %s18, 0
    %p39 = por %p37, %p38
    %p40 = scmp.ne.s32.totalorder %s26, %s27
    %p41 = scmp.eq.s32.totalorder %s19, 1
    %p42 = por %p40, %p41
    %p44 = scmp.ne.s32.totalorder %s27, %s43
    %p45 = scmp.eq.s32.totalorder %s19, 0
    %p46 = por %p44, %p45
    %s47 = ssub.s32 %s13, %s20
    %p48 = scmp.eq.s32.totalorder %s47, 0
    %s50 = sadd.s32 %s49, 1
    %s51 = scalar_select %p48, %s49, %s50
    %p54 = pneg %p48
    %p55 = scmp.eq.s32.totalorder %s13, 1
    %p56 = por %p54, %p55
    %p57 = scmp.ne.s32.totalorder %s49, %s52
    %p58 = scmp.eq.s32.totalorder %s13, 0
    %p59 = por %p57, %p58
    %p60 = scmp.ne.s32.totalorder %s49, %s52
    %p61 = scmp.eq.s32.totalorder %s18, 1
    %p62 = por %p60, %p61
    %p63 = scmp.ne.s32.totalorder %s52, %s53
    %p64 = scmp.eq.s32.totalorder %s18, 0
    %p65 = por %p63, %p64
    %p66 = scmp.ne.s32.totalorder %s52, %s53
    %p67 = scmp.eq.s32.totalorder %s19, 1
    %p68 = por %p66, %p67
    %p70 = scmp.ne.s32.totalorder %s53, %s69
    %p71 = scmp.eq.s32.totalorder %s19, 0
    %p72 = por %p70, %p71
    %s74 = sadd.s32 %s73, 1
    %p77 = scmp.eq.s32.totalorder %s13, 1
    %p78 = scmp.ne.s32.totalorder %s73, %s75
    %p79 = scmp.eq.s32.totalorder %s13, 0
    %p80 = por %p78, %p79
    %p81 = scmp.ne.s32.totalorder %s73, %s75
    %p82 = scmp.eq.s32.totalorder %s18, 1
    %p83 = por %p81, %p82
    %p84 = scmp.ne.s32.totalorder %s75, %s76
    %p85 = scmp.eq.s32.totalorder %s18, 0
    %p86 = por %p84, %p85
    %p87 = scmp.ne.s32.totalorder %s75, %s76
    %p88 = scmp.eq.s32.totalorder %s19, 1
    %p89 = por %p87, %p88
    %p91 = scmp.ne.s32.totalorder %s76, %s90
    %p92 = scmp.eq.s32.totalorder %s19, 0
    %p93 = por %p91, %p92
    %s95 = sadd.s32 %s94, 1
    %p98 = scmp.eq.s32.totalorder %s13, 1
    %p99 = scmp.ne.s32.totalorder %s94, %s96
    %p100 = scmp.eq.s32.totalorder %s13, 0
    %p101 = por %p99, %p100
    %p102 = scmp.ne.s32.totalorder %s94, %s96
    %p103 = scmp.eq.s32.totalorder %s18, 1
    %p104 = por %p102, %p103
    %p105 = scmp.ne.s32.totalorder %s96, %s97
    %p106 = scmp.eq.s32.totalorder %s18, 0
    %p107 = por %p105, %p106
    %p108 = scmp.ne.s32.totalorder %s96, %s97
    %p109 = scmp.eq.s32.totalorder %s19, 1
    %p110 = por %p108, %p109
    %p112 = scmp.ne.s32.totalorder %s97, %s111
    %p113 = scmp.eq.s32.totalorder %s19, 0
    %p114 = por %p112, %p113
    %s115 = ssub.s32 %s13, %s20
    %p116 = scmp.eq.s32.totalorder %s115, 0
    %s118 = sadd.s32 %s117, 1
    %s119 = scalar_select %p116, %s117, %s118
    %p122 = pneg %p116
    %p123 = scmp.eq.s32.totalorder %s13, 1
    %p124 = por %p122, %p123
    %p125 = scmp.ne.s32.totalorder %s117, %s120
    %p126 = scmp.eq.s32.totalorder %s13, 0
    %p127 = por %p125, %p126
    %p128 = scmp.ne.s32.totalorder %s117, %s120
    %p129 = scmp.eq.s32.totalorder %s18, 1
    %p130 = por %p128, %p129
    %p131 = scmp.ne.s32.totalorder %s120, %s121
    %p132 = scmp.eq.s32.totalorder %s18, 0
    %p133 = por %p131, %p132
    %p134 = scmp.ne.s32.totalorder %s120, %s121
    %p135 = scmp.eq.s32.totalorder %s19, 1
    %p136 = por %p134, %p135
    %p138 = scmp.ne.s32.totalorder %s121, %s137
    %p139 = scmp.eq.s32.totalorder %s19, 0
    %p140 = por %p138, %p139
    %s142 = sadd.s32 %s141, 1
    %p145 = scmp.eq.s32.totalorder %s13, 1
    %p146 = scmp.ne.s32.totalorder %s141, %s143
    %p147 = scmp.eq.s32.totalorder %s13, 0
    %p148 = por %p146, %p147
    %p149 = scmp.ne.s32.totalorder %s141, %s143
    %p150 = scmp.eq.s32.totalorder %s18, 1
    %p151 = por %p149, %p150
    %p152 = scmp.ne.s32.totalorder %s143, %s144
    %p153 = scmp.eq.s32.totalorder %s18, 0
    %p154 = por %p152, %p153
    %p155 = scmp.ne.s32.totalorder %s143, %s144
    %p156 = scmp.eq.s32.totalorder %s19, 1
    %p157 = por %p155, %p156
    %p159 = scmp.ne.s32.totalorder %s144, %s158
    %p160 = scmp.eq.s32.totalorder %s19, 0
    %p161 = por %p159, %p160
    %s163 = sadd.s32 %s162, 1
    %p166 = scmp.eq.s32.totalorder %s13, 1
    %p167 = scmp.ne.s32.totalorder %s162, %s164
    %p168 = scmp.eq.s32.totalorder %s13, 0
    %p169 = por %p167, %p168
    %p170 = scmp.ne.s32.totalorder %s162, %s164
    %p171 = scmp.eq.s32.totalorder %s18, 1
    %p172 = por %p170, %p171
    %p173 = scmp.ne.s32.totalorder %s164, %s165
    %p174 = scmp.eq.s32.totalorder %s18, 0
    %p175 = por %p173, %p174
    %p176 = scmp.ne.s32.totalorder %s164, %s165
    %p177 = scmp.eq.s32.totalorder %s19, 1
    %p178 = por %p176, %p177
    %p180 = scmp.ne.s32.totalorder %s165, %s179
    %p181 = scmp.eq.s32.totalorder %s19, 0
    %p182 = por %p180, %p181
    %s183 = ssub.s32 %s13, %s20
    %p184 = scmp.eq.s32.totalorder %s183, 0
    %s186 = sadd.s32 %s185, 1
    %s187 = scalar_select %p184, %s185, %s186
    %p190 = pneg %p184
    %p191 = scmp.eq.s32.totalorder %s13, 1
    %p192 = por %p190, %p191
    %p193 = scmp.ne.s32.totalorder %s185, %s188
    %p194 = scmp.eq.s32.totalorder %s13, 0
    %p195 = por %p193, %p194
    %p196 = scmp.ne.s32.totalorder %s185, %s188
    %p197 = scmp.eq.s32.totalorder %s18, 1
    %p198 = por %p196, %p197
    %p199 = scmp.ne.s32.totalorder %s188, %s189
    %p200 = scmp.eq.s32.totalorder %s18, 0
    %p201 = por %p199, %p200
    %p202 = scmp.ne.s32.totalorder %s188, %s189
    %p203 = scmp.eq.s32.totalorder %s19, 1
    %p204 = por %p202, %p203
    %p206 = scmp.ne.s32.totalorder %s189, %s205
    %p207 = scmp.eq.s32.totalorder %s19, 0
    %p208 = por %p206, %p207
    %p209 = scmp.le.s32.totalorder 1, %s13
    %p210 = scmp.lt.s32.totalorder %s13, 3
    %p211 = pnand %p209, %p210
    %p212 = pneg %p211
    // Predicated region
    $region9: #{resblock_forward.5} parent=5 // pred_check
      _
    $region10: #{resblock_forward.5} parent=5 // pred_check_branch
      %214 = sbr.rel (%p211) target = $region12
    $region11: #{resblock_forward.5} parent=5 // pred_region
      %s215 = ssub.s32 %s13, 1
      // Predicated region
      $region13: #{resblock_forward.5} parent=11 // pred_check
        %p216 = pneg %p86
      $region14: #{resblock_forward.5} parent=11 // pred_check_branch
        %218 = sbr.rel (%p216) target = $region16
      $region15: #{resblock_forward.5} parent=11 // pred_region
        _
      $region16: #{resblock_forward.5} parent=11 // pred_fallthru
        _
      // Predicated region
      $region17: #{resblock_forward.5} parent=11 // pred_check
        %p219 = pneg %p107
      $region18: #{resblock_forward.5} parent=11 // pred_check_branch
        %221 = sbr.rel (%p219) target = $region20
      $region19: #{resblock_forward.5} parent=11 // pred_region
        _
      $region20: #{resblock_forward.5} parent=11 // pred_fallthru
        _
      // Predicated region
      $region21: #{resblock_forward.5} parent=11 // pred_check
        %p222 = pneg %p154
      $region22: #{resblock_forward.5} parent=11 // pred_check_branch
        %224 = sbr.rel (%p222) target = $region24
      $region23: #{resblock_forward.5} parent=11 // pred_region
        _
      $region24: #{resblock_forward.5} parent=11 // pred_fallthru
        _
      // Predicated region
      $region25: #{resblock_forward.5} parent=11 // pred_check
        %p225 = pneg %p175
      $region26: #{resblock_forward.5} parent=11 // pred_check_branch
        %227 = sbr.rel (%p225) target = $region28
      $region27: #{resblock_forward.5} parent=11 // pred_region
        _
      $region28: #{resblock_forward.5} parent=11 // pred_fallthru
        _
    $region12: #{resblock_forward.5} parent=5 // pred_fallthru
      _
    %p228 = scmp.lt.s32.totalorder %s13, 2
    // Predicated region
    $region29: #{resblock_forward.5} parent=5 // pred_check
      %p229 = pneg %p228
    $region30: #{resblock_forward.5} parent=5 // pred_check_branch
      %231 = sbr.rel (%p229) target = $region32
    $region31: #{resblock_forward.5} parent=5 // pred_region
      // Predicated region
      $region33: #{resblock_forward.5} parent=31 // pred_check
        %p232 = pneg %p33
      $region34: #{resblock_forward.5} parent=31 // pred_check_branch
        %234 = sbr.rel (%p232) target = $region36
      $region35: #{resblock_forward.5} parent=31 // pred_region
        %p235 = scmp.lt.s32.totalorder %s13, 1
        %s236 = scalar_select %p235, %s13, 1
        %s237 = smul.addr %s236, 2
        %s238 = smul.addr %s237, 8
        %s239 = scalar_lea.vmem %s0, %s238
      $region36: #{resblock_forward.5} parent=31 // pred_fallthru
        _
      // Predicated region
      $region37: #{resblock_forward.5} parent=31 // pred_check
        %p240 = pneg %p59
      $region38: #{resblock_forward.5} parent=31 // pred_check_branch
        %242 = sbr.rel (%p240) target = $region40
      $region39: #{resblock_forward.5} parent=31 // pred_region
        %p243 = scmp.lt.s32.totalorder %s13, 1
        %s244 = scalar_select %p243, %s13, 1
        %s245 = smul.addr %s244, 2
        %s246 = smul.addr %s245, 8
        %s247 = scalar_lea.vmem %s1, %s246
      $region40: #{resblock_forward.5} parent=31 // pred_fallthru
        _
      // Predicated region
      $region41: #{resblock_forward.5} parent=31 // pred_check
        %p248 = pneg %p127
      $region42: #{resblock_forward.5} parent=31 // pred_check_branch
        %250 = sbr.rel (%p248) target = $region44
      $region43: #{resblock_forward.5} parent=31 // pred_region
        %p251 = scmp.lt.s32.totalorder %s13, 1
        %s252 = scalar_select %p251, %s13, 1
        %s253 = smul.addr %s252, 2
        %s254 = scalar_lea.vmem %s4, %s253
      $region44: #{resblock_forward.5} parent=31 // pred_fallthru
        _
    $region32: #{resblock_forward.5} parent=5 // pred_fallthru
      _
    %p255 = scmp.le.s32.totalorder 1, %s13
    %p256 = scmp.lt.s32.totalorder %s13, 3
    %p257 = pnand %p255, %p256
    %p258 = pneg %p257
    // Predicated region
    $region45: #{resblock_forward.5} parent=5 // pred_check
      _
    $region46: #{resblock_forward.5} parent=5 // pred_check_branch
      %260 = sbr.rel (%p257) target = $region48
    $region47: #{resblock_forward.5} parent=5 // pred_region
      %s261 = ssub.s32 %s13, 1
      %p262 = scmp.lt.s32.totalorder %s18, 1
      %s263 = scalar_select %p262, %s18, 1
      %s264 = smul.addr %s263, 2
      %s265 = smul.addr %s264, 8
      %s266 = scalar_lea.vmem %s0, %s265
      %p267 = pneg %p39
      %p268 = pneg %p36
      %p269 = scmp.lt.s32.totalorder %s18, 1
      %s270 = scalar_select %p269, %s18, 1
      %s271 = smul.addr %s270, 2
      %s272 = smul.addr %s271, 8
      %s273 = scalar_lea.vmem %s1, %s272
      %p274 = pneg %p65
      %p275 = pneg %p62
      %p276 = pneg %p86
      %p277 = pneg %p83
      %p278 = pneg %p107
      %p279 = pneg %p104
      %p280 = scmp.lt.s32.totalorder %s18, 1
      %s281 = scalar_select %p280, %s18, 1
      %s282 = smul.addr %s281, 2
      %s283 = scalar_lea.vmem %s4, %s282
      %p284 = pneg %p133
      %p285 = pneg %p130
      %p286 = pneg %p154
      %p287 = pneg %p151
      %p288 = pneg %p175
      %p289 = pneg %p172
      %p290 = pneg %p201
      %p291 = pneg %p198
      %p292 = scmp.lt.s32.totalorder %s18, 1
      %s293 = scalar_select %p292, %s18, 1
      %s294 = smul.addr %s293, 2
      %s295 = smul.addr %s294, 8
      %s296 = scalar_lea.vmem %s7, %s295
      %p297 = scmp.lt.s32.totalorder %s18, 1
      %s298 = scalar_select %p297, %s18, 1
      %s299 = smul.addr %s298, 2
      %s300 = smul.addr %s299, 8
      %s301 = scalar_lea.vmem %s0, %s300
      %p302 = scmp.lt.s32.totalorder %s18, 1
      %s303 = scalar_select %p302, %s18, 1
      %s304 = smul.addr %s303, 2
      %s305 = smul.addr %s304, 8
      %s306 = scalar_lea.vmem %s1, %s305
      %p307 = scmp.lt.s32.totalorder %s18, 1
      %s308 = scalar_select %p307, %s18, 1
      %s309 = smul.addr %s308, 2
      %s310 = scalar_lea.vmem %s4, %s309
      %p311 = scmp.lt.s32.totalorder %s18, 1
      %s312 = scalar_select %p311, %s18, 1
      %s313 = smul.addr %s312, 2
      %s314 = smul.addr %s313, 8
      %s315 = scalar_lea.vmem %s7, %s314
      %v316 = vld [vmem:[%s301] sm:$0xff]
      %v317 = vld [vmem:[%s301 + $0x8] sm:$0xff]
      %v318 = vld [vmem:[%s2] sm:$0x3]
      %v320 = vlaneseq
      %v321 = vshrl.u32 %v320, 7
      %v322 = vsub.s32 0, %v321
      %v323 = vrot.slane %v318, %v322
      %v324 = vlaneseq
      %v325 = vshrl.u32 %v324, 7
      %v326 = vsub.s32 1, %v325
      %v327 = vrot.slane %v318, %v326
      %v330 = vmul.f32 %v316, %v323
      %v331 = vmul.f32 %v317, %v327
      %v332 = vld [vmem:[%s3] sm:$0x3]
      %v334 = vlaneseq
      %v335 = vshrl.u32 %v334, 7
      %v336 = vsub.s32 0, %v335
      %v337 = vrot.slane %v332, %v336
      %v338 = vlaneseq
      %v339 = vshrl.u32 %v338, 7
      %v340 = vsub.s32 1, %v339
      %v341 = vrot.slane %v332, %v340
      %v344 = vadd.f32 %v330, %v337
      %v345 = vadd.f32 %v331, %v341
      %v346 = vld [vmem:[%s306] sm:$0xff]
      %v347 = vld [vmem:[%s306 + $0x8] sm:$0xff]
      %v348 = vld [vmem:[%s5] sm:$0x3]
      %v350 = vlaneseq
      %v351 = vshrl.u32 %v350, 7
      %v352 = vsub.s32 0, %v351
      %v353 = vrot.slane %v348, %v352
      %v354 = vlaneseq
      %v355 = vshrl.u32 %v354, 7
      %v356 = vsub.s32 1, %v355
      %v357 = vrot.slane %v348, %v356
      %v360 = vmul.f32 %v346, %v353
      %v361 = vmul.f32 %v347, %v357
      %v362 = vld [vmem:[%s6] sm:$0x3]
      %v364 = vlaneseq
      %v365 = vshrl.u32 %v364, 7
      %v366 = vsub.s32 0, %v365
      %v367 = vrot.slane %v362, %v366
      %v368 = vlaneseq
      %v369 = vshrl.u32 %v368, 7
      %v370 = vsub.s32 1, %v369
      %v371 = vrot.slane %v362, %v370
      %v374 = vadd.f32 %v360, %v367
      %v375 = vadd.f32 %v361, %v371
      %v376 = vld [vmem:[%s310] sm:$0x3]
      %v378 = vlaneseq
      %v379 = vshrl.u32 %v378, 7
      %v380 = vsub.s32 0, %v379
      %v381 = vrot.slane %v376, %v380
      %v382 = vlaneseq
      %v383 = vshrl.u32 %v382, 7
      %v384 = vsub.s32 1, %v383
      %v385 = vrot.slane %v376, %v384
      %v388 = vmul.f32 %v344, %v381
      %v389 = vmul.f32 %v345, %v385
      %v390 = vadd.f32 %v388, %v374
      %v391 = vadd.f32 %v389, %v375
      %v392 = vmax.f32 %v390, 0.0
      %v393 = vmax.f32 %v391, 0.0
      %394 = vst [vmem:[%s315] sm:$0xff] %v392
      %395 = vst [vmem:[%s315 + $0x8] sm:$0xff] %v393
      %p396 = scmp.lt.s32.totalorder %s18, 1
      %s397 = scalar_select %p396, %s18, 1
      %s398 = smul.addr %s397, 2
      %s399 = smul.addr %s398, 8
      %s400 = scalar_lea.vmem %s7, %s399
      // Predicated region
      $region49: #{resblock_forward.5} parent=47 // pred_check
        %p401 = pneg %p198
      $region50: #{resblock_forward.5} parent=47 // pred_check_branch
        %403 = sbr.rel (%p401) target = $region52
      $region51: #{resblock_forward.5} parent=47 // pred_region
        _
      $region52: #{resblock_forward.5} parent=47 // pred_fallthru
        _
    $region48: #{resblock_forward.5} parent=5 // pred_fallthru
      _
    %p404 = scmp.le.s32.totalorder 2, %s13
    // Predicated region
    $region53: #{resblock_forward.5} parent=5 // pred_check
      %p405 = pneg %p404
    $region54: #{resblock_forward.5} parent=5 // pred_check_branch
      %407 = sbr.rel (%p405) target = $region56
    $region55: #{resblock_forward.5} parent=5 // pred_region
      %s408 = ssub.s32 %s13, 2
      // Predicated region
      $region57: #{resblock_forward.5} parent=55 // pred_check
        %p409 = pneg %p204
      $region58: #{resblock_forward.5} parent=55 // pred_check_branch
        %411 = sbr.rel (%p409) target = $region60
      $region59: #{resblock_forward.5} parent=55 // pred_region
        %p412 = scmp.lt.s32.totalorder %s19, 1
        %s413 = scalar_select %p412, %s19, 1
        %s414 = smul.addr %s413, 2
        %s415 = smul.addr %s414, 8
        %s416 = scalar_lea.vmem %s7, %s415
      $region60: #{resblock_forward.5} parent=55 // pred_fallthru
        _
    $region56: #{resblock_forward.5} parent=5 // pred_fallthru
      _
  $region6: #{resblock_forward.5} parent=0 // loop_footer
    %s17 = sadd.s32 1, %s13
  $region7: #{resblock_forward.5} parent=0 // loop_footer_branch
    %12 = sbr.rel target = $region3
  $region8: #{resblock_forward.5} parent=0 // loop_exit
    _

</llo_original>
